<compile_context>
chip_gen: v6e
topology: v6e:2x2x1
jax: 0.10.0
libtpu: 0.0.40
codegen_flags: <defaults>
</compile_context>

<pallas_src>
import functools

import jax
import jax.numpy as jnp
from jax.experimental import pallas as pl
from jax.experimental.pallas import tpu as pltpu


def _vanilla_lstm_kernel(
    x_ref,        # (T*B, IN)   f32, time-major, flattened
    w_emb_ref,    # (IN, E)     f32, pre-transposed
    b_emb_ref,    # (1, E)      f32
    w_ih_ref,     # (E, 4C)     bf16, pre-transposed, i/f/o columns pre-scaled by 0.5
    b_gates_ref,  # (1, 4C)     f32, b_ih + b_hh pre-summed, i/f/o pre-scaled by 0.5
    w_hh_ref,     # (C, 4C)     bf16, pre-transposed, i/f/o columns pre-scaled by 0.5
    w_out_ref,    # (C, OP)     bf16, pre-transposed, lane-padded (OP multiple of 128)
    b_out_ref,    # (1, OP)     f32, lane-padded
    y_ref,        # (T*B, OP)   lane-dense output slab
    h_out_ref,    # (B, C)      final hidden state
    c_out_ref,    # (B, C)      final cell state
    gx_scr,       # VMEM (T*B, 4C) f32  precomputed input-side gate contributions
    h_all_scr,    # VMEM (T*B, C)  f32  per-step hidden states
    *,
    seq_len: int,
    batch: int,
    cell_size: int,
    input_dim: int,
):
  T, B, C, IN = seq_len, batch, cell_size, input_dim

  # ---- Prologue: embedding MLP on the VPU (K = input_dim is tiny). ----
  x = x_ref[...]                                               # (T*B, IN)
  acc = x[:, 0:1] * w_emb_ref[0:1, :]
  for k in range(1, IN):                                       # static, tiny
    acc = acc + x[:, k:k + 1] * w_emb_ref[k:k + 1, :]
  emd = jnp.maximum(acc + b_emb_ref[...], 0.0)                 # (T*B, E) f32

  # All input-side gate contributions as ONE bf16 MXU matmul (M = T*B).
  gx_scr[...] = (
      jnp.dot(emd.astype(jnp.bfloat16), w_ih_ref[...],
              preferred_element_type=jnp.float32)
      + b_gates_ref[...]                                       # (T*B, 4C) f32
  )

  w_hh = w_hh_ref[...]                                         # (C, 4C) bf16, resident

  # Hoisted constants for the single-tanh activation over the packed gate vreg:
  #   i/f/o pre-activations arrive pre-scaled by 0.5, so
  #   sigmoid(x) = 0.5 * tanh(x/2) + 0.5 ; g stays tanh(x).
  lane = jax.lax.broadcasted_iota(jnp.int32, (B, 4 * C), 1)
  is_g = jnp.logical_and(lane >= 2 * C, lane < 3 * C)
  scale_vec = jnp.where(is_g, 1.0, 0.5).astype(jnp.float32)
  offset_vec = jnp.where(is_g, 0.0, 0.5).astype(jnp.float32)

  def step(t, carry):
    h_prev, c_prev = carry
    off = pl.multiple_of(t * B, B)
    gx = gx_scr[pl.ds(off, B), :]                              # (B, 4C)
    gates = gx + jnp.dot(h_prev.astype(jnp.bfloat16), w_hh,
                         preferred_element_type=jnp.float32)
    # One EUP pass over the full 4C-lane vector + a VPU FMA.
    act = jnp.tanh(gates) * scale_vec + offset_vec
    i_g = act[:, 0 * C:1 * C]
    f_g = act[:, 1 * C:2 * C]
    g_g = act[:, 2 * C:3 * C]
    o_g = act[:, 3 * C:4 * C]
    c_new = f_g * c_prev + i_g * g_g
    h_new = o_g * jnp.tanh(c_new)
    h_all_scr[pl.ds(off, B), :] = h_new
    return h_new, c_new

  h0 = jnp.zeros((B, C), jnp.float32)
  c0 = jnp.zeros((B, C), jnp.float32)
  h_fin, c_fin = jax.lax.fori_loop(0, T, step, (h0, c0), unroll=True)

  # ---- Epilogue: single batched, lane-dense output projection (bf16 MXU). ----
  y = jnp.dot(h_all_scr[...].astype(jnp.bfloat16), w_out_ref[...],
              preferred_element_type=jnp.float32)
  y_ref[...] = (y + b_out_ref[...]).astype(y_ref.dtype)
  h_out_ref[...] = h_fin.astype(h_out_ref.dtype)
  c_out_ref[...] = c_fin.astype(c_out_ref.dtype)


def vanilla_lstm_forward(inputs, params):
  """inputs: (B, T, input_dim) f32 -> (outputs (B, T, output_dim), (h, c))."""
  B, T, IN = inputs.shape
  E = params["w_emb"].shape[0]
  C = params["w_hh"].shape[1]
  O = params["w_out"].shape[0]
  OP = ((O + 127) // 128) * 128  # lane-dense padded output width

  # Time-major, flattened to (T*B, IN) so the input-side math is one matmul.
  x_flat = jnp.transpose(inputs, (1, 0, 2)).reshape(T * B, IN)

  # Gate-column scale implementing sigmoid(x) = 0.5*tanh(x/2) + 0.5:
  # pre-scale i/f/o gate pre-activations by 0.5 (g column block stays at 1).
  col = jnp.arange(4 * C)
  gate_scale = jnp.where((col >= 2 * C) & (col < 3 * C), 1.0, 0.5).astype(jnp.float32)

  # One-time weight re-layout: (out, in) -> (in, out); pre-sum LSTM biases;
  # bf16-cast the MXU operands (exact 0.5 pre-scale happens before the cast).
  w_emb_t = params["w_emb"].T                                           # (IN, E) f32
  b_emb = params["b_emb"].reshape(1, E)
  w_ih_t = (params["w_ih"].T * gate_scale[None, :]).astype(jnp.bfloat16)   # (E, 4C)
  w_hh_t = (params["w_hh"].T * gate_scale[None, :]).astype(jnp.bfloat16)   # (C, 4C)
  b_gates = ((params["b_ih"] + params["b_hh"]) * gate_scale).reshape(1, 4 * C)
  w_out_t = jnp.pad(params["w_out"].T, ((0, 0), (0, OP - O))).astype(jnp.bfloat16)
  b_out = jnp.pad(params["b_out"].reshape(1, O), ((0, 0), (0, OP - O)))

  kernel = functools.partial(
      _vanilla_lstm_kernel, seq_len=T, batch=B, cell_size=C, input_dim=IN)

  vmem = pl.BlockSpec(memory_space=pltpu.MemorySpace.VMEM)
  out_shapes = (
      jax.ShapeDtypeStruct((T * B, OP), jnp.float32),  # y (time-major, padded)
      jax.ShapeDtypeStruct((B, C), jnp.float32),       # final h
      jax.ShapeDtypeStruct((B, C), jnp.float32),       # final c
  )

  # Single invocation (no grid): the whole problem (~100 KB) fits VMEM on all
  # generations. If T*B ever scales up, tile the prologue/epilogue with a grid
  # or raise vmem_limit_bytes via pltpu.CompilerParams.
  y_pad, h_fin, c_fin = pl.pallas_call(
      kernel,
      out_shape=out_shapes,
      in_specs=[vmem] * 8,
      out_specs=(vmem, vmem, vmem),
      scratch_shapes=[
          pltpu.VMEM((T * B, 4 * C), jnp.float32),  # gates_x
          pltpu.VMEM((T * B, C), jnp.float32),      # stacked hidden states
      ],
  )(x_flat, w_emb_t, b_emb, w_ih_t, b_gates, w_hh_t, w_out_t, b_out)

  outputs = jnp.transpose(y_pad[:, :O].reshape(T, B, O), (1, 0, 2))  # (B, T, O)
  return outputs, (h_fin, c_fin)


def vanilla_lstm_reference(inputs, params, matmul_dtype=jnp.float32):
  """Pure-JAX reference mirroring the PyTorch forward (batch_norm=False).

  With matmul_dtype=bfloat16 the three matmuls use bf16 operands (f32 accum),
  matching the kernel's MXU precision for a tight correctness check.
  """
  B, T, _ = inputs.shape
  C = params["w_hh"].shape[1]
  md = matmul_dtype
  w_ih_t = params["w_ih"].T.astype(md)
  w_hh_t = params["w_hh"].T.astype(md)
  w_out_t = params["w_out"].T.astype(md)
  h = jnp.zeros((B, C), jnp.float32)
  c = jnp.zeros((B, C), jnp.float32)
  outs = []
  for t in range(T):
    x_t = inputs[:, t, :]
    emd = jnp.maximum(x_t @ params["w_emb"].T + params["b_emb"], 0.0)
    gates = (jnp.dot(emd.astype(md), w_ih_t, preferred_element_type=jnp.float32)
             + params["b_ih"]
             + jnp.dot(h.astype(md), w_hh_t, preferred_element_type=jnp.float32)
             + params["b_hh"])
    i_g = jax.nn.sigmoid(gates[:, 0 * C:1 * C])
    f_g = jax.nn.sigmoid(gates[:, 1 * C:2 * C])
    g_g = jnp.tanh(gates[:, 2 * C:3 * C])
    o_g = jax.nn.sigmoid(gates[:, 3 * C:4 * C])
    c = f_g * c + i_g * g_g
    h = o_g * jnp.tanh(c)
    outs.append(
        jnp.dot(h.astype(md), w_out_t, preferred_element_type=jnp.float32)
        + params["b_out"])
  return jnp.stack(outs, axis=1), (h, c)


def init_params(key, input_dim, emd_size, cell_size, output_dim):
  ks = jax.random.split(key, 8)
  u = lambda k, shape, fan: jax.random.uniform(
      k, shape, jnp.float32, -1.0 / jnp.sqrt(fan), 1.0 / jnp.sqrt(fan))
  return {
      "w_emb": u(ks[0], (emd_size, input_dim), input_dim),
      "b_emb": u(ks[1], (emd_size,), input_dim),
      "w_ih": u(ks[2], (4 * cell_size, emd_size), cell_size),
      "b_ih": u(ks[3], (4 * cell_size,), cell_size),
      "w_hh": u(ks[4], (4 * cell_size, cell_size), cell_size),
      "b_hh": u(ks[5], (4 * cell_size,), cell_size),
      "w_out": u(ks[6], (output_dim, cell_size), cell_size),
      "b_out": u(ks[7], (output_dim,), cell_size),
  }


if __name__ == "__main__":
  # Small shapes consistent with the module's forward: (batch, seq, input_dim=2).
  B, T = 8, 8
  INPUT_DIM, OUTPUT_DIM = 2, 5
  EMD_SIZE, CELL_SIZE = 32, 32

  key = jax.random.PRNGKey(0)
  k_x, k_p = jax.random.split(key)
  x = jax.random.normal(k_x, (B, T, INPUT_DIM), jnp.float32)
  params = init_params(k_p, INPUT_DIM, EMD_SIZE, CELL_SIZE, OUTPUT_DIM)

  # TODO(synk): batch_norm=True / dropout>0 branches of make_mlp are not implemented
  # (constructor config modeled here is batch_norm=False, dropout=0).

  outputs, (h_fin, c_fin) = vanilla_lstm_forward(x, params)
  jax.block_until_ready((outputs, h_fin, c_fin))

  assert outputs.shape == (B, T, OUTPUT_DIM)
  assert h_fin.shape == (B, CELL_SIZE) and c_fin.shape == (B, CELL_SIZE)

  # Tight check against a reference with matching bf16 MXU operand precision.
  ref_out_bf, (ref_h_bf, ref_c_bf) = vanilla_lstm_reference(
      x, params, matmul_dtype=jnp.bfloat16)
  assert jnp.allclose(outputs, ref_out_bf, atol=2e-3, rtol=2e-3)
  assert jnp.allclose(h_fin, ref_h_bf, atol=2e-3, rtol=2e-3)
  assert jnp.allclose(c_fin, ref_c_bf, atol=2e-3, rtol=2e-3)

  # Looser check against the pure-f32 reference (difference is the intentional
  # bf16 quantization of the MXU operands, compounding over the T-step chain).
  ref_out, (ref_h, ref_c) = vanilla_lstm_reference(x, params)
  assert jnp.allclose(outputs, ref_out, atol=2e-2, rtol=2e-2)
  assert jnp.allclose(h_fin, ref_h, atol=2e-2, rtol=2e-2)
  assert jnp.allclose(c_fin, ref_c, atol=2e-2, rtol=2e-2)

  print("KERNEL_OK")
</pallas_src>

<mosaic_0001>
module attributes {stable_mosaic.version = 11 : i64} {
  func.func @_vanilla_lstm_kernel(%arg0: memref<64x2xf32, #tpu.memory_space<vmem>>, %arg1: memref<2x32xf32, #tpu.memory_space<vmem>>, %arg2: memref<1x32xf32, #tpu.memory_space<vmem>>, %arg3: memref<32x128xbf16, #tpu.memory_space<vmem>>, %arg4: memref<1x128xf32, #tpu.memory_space<vmem>>, %arg5: memref<32x128xbf16, #tpu.memory_space<vmem>>, %arg6: memref<32x128xbf16, #tpu.memory_space<vmem>>, %arg7: memref<1x128xf32, #tpu.memory_space<vmem>>, %arg8: memref<64x128xf32, #tpu.memory_space<vmem>>, %arg9: memref<8x32xf32, #tpu.memory_space<vmem>>, %arg10: memref<8x32xf32, #tpu.memory_space<vmem>>, %arg11: memref<64x128xf32, #tpu.memory_space<vmem>>, %arg12: memref<64x32xf32, #tpu.memory_space<vmem>>) attributes {dimension_semantics = [], scalar_prefetch = 0 : i64, scratch_operands = 2 : i64, tpu.core_type = #tpu.core_type<tc>} {
    %c0 = arith.constant 0 : index
    %c0_0 = arith.constant 0 : index
    %0 = vector.load %arg0[%c0, %c0_0] : memref<64x2xf32, #tpu.memory_space<vmem>>, vector<64x2xf32>
    %1 = vector.extract_strided_slice %0 {offsets = [0, 0], sizes = [64, 1], strides = [1, 1]} : vector<64x2xf32> to vector<64x1xf32>
    %c0_1 = arith.constant 0 : index
    %c0_2 = arith.constant 0 : index
    %2 = vector.load %arg1[%c0_1, %c0_2] : memref<2x32xf32, #tpu.memory_space<vmem>>, vector<1x32xf32>
    %3 = vector.broadcast %1 : vector<64x1xf32> to vector<64x32xf32>
    %4 = vector.broadcast %2 : vector<1x32xf32> to vector<64x32xf32>
    %5 = arith.mulf %3, %4 : vector<64x32xf32>
    %6 = vector.extract_strided_slice %0 {offsets = [0, 1], sizes = [64, 1], strides = [1, 1]} : vector<64x2xf32> to vector<64x1xf32>
    %c1 = arith.constant 1 : index
    %c0_3 = arith.constant 0 : index
    %7 = vector.load %arg1[%c1, %c0_3] : memref<2x32xf32, #tpu.memory_space<vmem>>, vector<1x32xf32>
    %8 = vector.broadcast %6 : vector<64x1xf32> to vector<64x32xf32>
    %9 = vector.broadcast %7 : vector<1x32xf32> to vector<64x32xf32>
    %10 = arith.mulf %8, %9 : vector<64x32xf32>
    %11 = arith.addf %5, %10 : vector<64x32xf32>
    %c0_4 = arith.constant 0 : index
    %c0_5 = arith.constant 0 : index
    %12 = vector.load %arg2[%c0_4, %c0_5] : memref<1x32xf32, #tpu.memory_space<vmem>>, vector<1x32xf32>
    %13 = vector.broadcast %12 : vector<1x32xf32> to vector<64x32xf32>
    %14 = arith.addf %11, %13 : vector<64x32xf32>
    %cst = arith.constant 0.000000e+00 : f32
    %15 = vector.broadcast %cst : f32 to vector<64x32xf32>
    %16 = arith.maximumf %14, %15 : vector<64x32xf32>
    %17 = arith.truncf %16 : vector<64x32xf32> to vector<64x32xbf16>
    %c0_6 = arith.constant 0 : index
    %c0_7 = arith.constant 0 : index
    %18 = vector.load %arg3[%c0_6, %c0_7] : memref<32x128xbf16, #tpu.memory_space<vmem>>, vector<32x128xbf16>
    %cst_8 = arith.constant dense<0.000000e+00> : vector<64x128xf32>
    %19 = tpu.matmul %17, %18, %cst_8 {dimension_numbers = #tpu.dot_dimension_numbers<[1], [0], [0], [1], [0, 0, 1, 1], [], []>} : vector<64x32xbf16>, vector<32x128xbf16>, vector<64x128xf32> -> vector<64x128xf32>
    %c0_9 = arith.constant 0 : index
    %c0_10 = arith.constant 0 : index
    %20 = vector.load %arg4[%c0_9, %c0_10] : memref<1x128xf32, #tpu.memory_space<vmem>>, vector<1x128xf32>
    %21 = vector.broadcast %20 : vector<1x128xf32> to vector<64x128xf32>
    %22 = arith.addf %19, %21 : vector<64x128xf32>
    %c0_11 = arith.constant 0 : index
    %c0_12 = arith.constant 0 : index
    %23 = vector.load %arg11[%c0_11, %c0_12] : memref<64x128xf32, #tpu.memory_space<vmem>>, vector<64x128xf32>
    tpu.vector_store %arg11[%c0_11, %c0_12], %22 {strides = array<i32>} : memref<64x128xf32, #tpu.memory_space<vmem>>, vector<64x128xf32>,
    %c0_13 = arith.constant 0 : index
    %c0_14 = arith.constant 0 : index
    %24 = vector.load %arg5[%c0_13, %c0_14] : memref<32x128xbf16, #tpu.memory_space<vmem>>, vector<32x128xbf16>
    %25 = tpu.iota {dimensions = array<i32: 1>} : vector<8x128xi32>
    %c64_i32 = arith.constant 64 : i32
    %26 = vector.broadcast %c64_i32 : i32 to vector<8x128xi32>
    %27 = arith.cmpi sge, %25, %26 : vector<8x128xi32>
    %c96_i32 = arith.constant 96 : i32
    %28 = vector.broadcast %c96_i32 : i32 to vector<8x128xi32>
    %29 = arith.cmpi slt, %25, %28 : vector<8x128xi32>
    %30 = arith.andi %27, %29 : vector<8x128xi1>
    %cst_15 = arith.constant 1.000000e+00 : f32
    %cst_16 = arith.constant 5.000000e-01 : f32
    %31 = vector.broadcast %cst_15 : f32 to vector<8x128xf32>
    %32 = vector.broadcast %cst_16 : f32 to vector<8x128xf32>
    %33 = arith.select %30, %31, %32 : vector<8x128xi1>, vector<8x128xf32>
    %cst_17 = arith.constant 0.000000e+00 : f32
    %cst_18 = arith.constant 5.000000e-01 : f32
    %34 = vector.broadcast %cst_17 : f32 to vector<8x128xf32>
    %35 = vector.broadcast %cst_18 : f32 to vector<8x128xf32>
    %36 = arith.select %30, %34, %35 : vector<8x128xi1>, vector<8x128xf32>
    %cst_19 = arith.constant 0.000000e+00 : f32
    %37 = vector.broadcast %cst_19 : f32 to vector<8x32xf32>
    %cst_20 = arith.constant 0.000000e+00 : f32
    %38 = vector.broadcast %cst_20 : f32 to vector<8x32xf32>
    %c0_i32 = arith.constant 0 : i32
    %c8_i32 = arith.constant 8 : i32
    %39 = arith.muli %c0_i32, %c8_i32 : i32
    %40 = tpu.assume_multiple %39, 8 : i32
    %41 = arith.index_cast %40 : i32 to index
    %c0_21 = arith.constant 0 : index
    %42 = vector.load %arg11[%41, %c0_21] : memref<64x128xf32, #tpu.memory_space<vmem>>, vector<8x128xf32>
    %43 = arith.truncf %37 : vector<8x32xf32> to vector<8x32xbf16>
    %cst_22 = arith.constant dense<0.000000e+00> : vector<8x128xf32>
    %44 = tpu.matmul %43, %24, %cst_22 {dimension_numbers = #tpu.dot_dimension_numbers<[1], [0], [0], [1], [0, 0, 1, 1], [], []>} : vector<8x32xbf16>, vector<32x128xbf16>, vector<8x128xf32> -> vector<8x128xf32>
    %45 = arith.addf %42, %44 : vector<8x128xf32>
    %46 = math.tanh %45 : vector<8x128xf32>
    %47 = arith.mulf %46, %33 : vector<8x128xf32>
    %48 = arith.addf %47, %36 : vector<8x128xf32>
    %49 = vector.extract_strided_slice %48 {offsets = [0, 0], sizes = [8, 32], strides = [1, 1]} : vector<8x128xf32> to vector<8x32xf32>
    %50 = vector.extract_strided_slice %48 {offsets = [0, 32], sizes = [8, 32], strides = [1, 1]} : vector<8x128xf32> to vector<8x32xf32>
    %51 = vector.extract_strided_slice %48 {offsets = [0, 64], sizes = [8, 32], strides = [1, 1]} : vector<8x128xf32> to vector<8x32xf32>
    %52 = vector.extract_strided_slice %48 {offsets = [0, 96], sizes = [8, 32], strides = [1, 1]} : vector<8x128xf32> to vector<8x32xf32>
    %53 = arith.mulf %50, %38 : vector<8x32xf32>
    %54 = arith.mulf %49, %51 : vector<8x32xf32>
    %55 = arith.addf %53, %54 : vector<8x32xf32>
    %56 = math.tanh %55 : vector<8x32xf32>
    %57 = arith.mulf %52, %56 : vector<8x32xf32>
    %58 = arith.index_cast %40 : i32 to index
    %c0_23 = arith.constant 0 : index
    %59 = vector.load %arg12[%58, %c0_23] : memref<64x32xf32, #tpu.memory_space<vmem>>, vector<8x32xf32>
    tpu.vector_store %arg12[%58, %c0_23], %57 {strides = array<i32>} : memref<64x32xf32, #tpu.memory_space<vmem>>, vector<8x32xf32>,
    %c1_i32 = arith.constant 1 : i32
    %c8_i32_24 = arith.constant 8 : i32
    %60 = arith.muli %c1_i32, %c8_i32_24 : i32
    %61 = tpu.assume_multiple %60, 8 : i32
    %62 = arith.index_cast %61 : i32 to index
    %c0_25 = arith.constant 0 : index
    %63 = vector.load %arg11[%62, %c0_25] : memref<64x128xf32, #tpu.memory_space<vmem>>, vector<8x128xf32>
    %64 = arith.truncf %57 : vector<8x32xf32> to vector<8x32xbf16>
    %cst_26 = arith.constant dense<0.000000e+00> : vector<8x128xf32>
    %65 = tpu.matmul %64, %24, %cst_26 {dimension_numbers = #tpu.dot_dimension_numbers<[1], [0], [0], [1], [0, 0, 1, 1], [], []>} : vector<8x32xbf16>, vector<32x128xbf16>, vector<8x128xf32> -> vector<8x128xf32>
    %66 = arith.addf %63, %65 : vector<8x128xf32>
    %67 = math.tanh %66 : vector<8x128xf32>
    %68 = arith.mulf %67, %33 : vector<8x128xf32>
    %69 = arith.addf %68, %36 : vector<8x128xf32>
    %70 = vector.extract_strided_slice %69 {offsets = [0, 0], sizes = [8, 32], strides = [1, 1]} : vector<8x128xf32> to vector<8x32xf32>
    %71 = vector.extract_strided_slice %69 {offsets = [0, 32], sizes = [8, 32], strides = [1, 1]} : vector<8x128xf32> to vector<8x32xf32>
    %72 = vector.extract_strided_slice %69 {offsets = [0, 64], sizes = [8, 32], strides = [1, 1]} : vector<8x128xf32> to vector<8x32xf32>
    %73 = vector.extract_strided_slice %69 {offsets = [0, 96], sizes = [8, 32], strides = [1, 1]} : vector<8x128xf32> to vector<8x32xf32>
    %74 = arith.mulf %71, %55 : vector<8x32xf32>
    %75 = arith.mulf %70, %72 : vector<8x32xf32>
    %76 = arith.addf %74, %75 : vector<8x32xf32>
    %77 = math.tanh %76 : vector<8x32xf32>
    %78 = arith.mulf %73, %77 : vector<8x32xf32>
    %79 = arith.index_cast %61 : i32 to index
    %c0_27 = arith.constant 0 : index
    %80 = vector.load %arg12[%79, %c0_27] : memref<64x32xf32, #tpu.memory_space<vmem>>, vector<8x32xf32>
    tpu.vector_store %arg12[%79, %c0_27], %78 {strides = array<i32>} : memref<64x32xf32, #tpu.memory_space<vmem>>, vector<8x32xf32>,
    %c2_i32 = arith.constant 2 : i32
    %c8_i32_28 = arith.constant 8 : i32
    %81 = arith.muli %c2_i32, %c8_i32_28 : i32
    %82 = tpu.assume_multiple %81, 8 : i32
    %83 = arith.index_cast %82 : i32 to index
    %c0_29 = arith.constant 0 : index
    %84 = vector.load %arg11[%83, %c0_29] : memref<64x128xf32, #tpu.memory_space<vmem>>, vector<8x128xf32>
    %85 = arith.truncf %78 : vector<8x32xf32> to vector<8x32xbf16>
    %cst_30 = arith.constant dense<0.000000e+00> : vector<8x128xf32>
    %86 = tpu.matmul %85, %24, %cst_30 {dimension_numbers = #tpu.dot_dimension_numbers<[1], [0], [0], [1], [0, 0, 1, 1], [], []>} : vector<8x32xbf16>, vector<32x128xbf16>, vector<8x128xf32> -> vector<8x128xf32>
    %87 = arith.addf %84, %86 : vector<8x128xf32>
    %88 = math.tanh %87 : vector<8x128xf32>
    %89 = arith.mulf %88, %33 : vector<8x128xf32>
    %90 = arith.addf %89, %36 : vector<8x128xf32>
    %91 = vector.extract_strided_slice %90 {offsets = [0, 0], sizes = [8, 32], strides = [1, 1]} : vector<8x128xf32> to vector<8x32xf32>
    %92 = vector.extract_strided_slice %90 {offsets = [0, 32], sizes = [8, 32], strides = [1, 1]} : vector<8x128xf32> to vector<8x32xf32>
    %93 = vector.extract_strided_slice %90 {offsets = [0, 64], sizes = [8, 32], strides = [1, 1]} : vector<8x128xf32> to vector<8x32xf32>
    %94 = vector.extract_strided_slice %90 {offsets = [0, 96], sizes = [8, 32], strides = [1, 1]} : vector<8x128xf32> to vector<8x32xf32>
    %95 = arith.mulf %92, %76 : vector<8x32xf32>
    %96 = arith.mulf %91, %93 : vector<8x32xf32>
    %97 = arith.addf %95, %96 : vector<8x32xf32>
    %98 = math.tanh %97 : vector<8x32xf32>
    %99 = arith.mulf %94, %98 : vector<8x32xf32>
    %100 = arith.index_cast %82 : i32 to index
    %c0_31 = arith.constant 0 : index
    %101 = vector.load %arg12[%100, %c0_31] : memref<64x32xf32, #tpu.memory_space<vmem>>, vector<8x32xf32>
    tpu.vector_store %arg12[%100, %c0_31], %99 {strides = array<i32>} : memref<64x32xf32, #tpu.memory_space<vmem>>, vector<8x32xf32>,
    %c3_i32 = arith.constant 3 : i32
    %c8_i32_32 = arith.constant 8 : i32
    %102 = arith.muli %c3_i32, %c8_i32_32 : i32
    %103 = tpu.assume_multiple %102, 8 : i32
    %104 = arith.index_cast %103 : i32 to index
    %c0_33 = arith.constant 0 : index
    %105 = vector.load %arg11[%104, %c0_33] : memref<64x128xf32, #tpu.memory_space<vmem>>, vector<8x128xf32>
    %106 = arith.truncf %99 : vector<8x32xf32> to vector<8x32xbf16>
    %cst_34 = arith.constant dense<0.000000e+00> : vector<8x128xf32>
    %107 = tpu.matmul %106, %24, %cst_34 {dimension_numbers = #tpu.dot_dimension_numbers<[1], [0], [0], [1], [0, 0, 1, 1], [], []>} : vector<8x32xbf16>, vector<32x128xbf16>, vector<8x128xf32> -> vector<8x128xf32>
    %108 = arith.addf %105, %107 : vector<8x128xf32>
    %109 = math.tanh %108 : vector<8x128xf32>
    %110 = arith.mulf %109, %33 : vector<8x128xf32>
    %111 = arith.addf %110, %36 : vector<8x128xf32>
    %112 = vector.extract_strided_slice %111 {offsets = [0, 0], sizes = [8, 32], strides = [1, 1]} : vector<8x128xf32> to vector<8x32xf32>
    %113 = vector.extract_strided_slice %111 {offsets = [0, 32], sizes = [8, 32], strides = [1, 1]} : vector<8x128xf32> to vector<8x32xf32>
    %114 = vector.extract_strided_slice %111 {offsets = [0, 64], sizes = [8, 32], strides = [1, 1]} : vector<8x128xf32> to vector<8x32xf32>
    %115 = vector.extract_strided_slice %111 {offsets = [0, 96], sizes = [8, 32], strides = [1, 1]} : vector<8x128xf32> to vector<8x32xf32>
    %116 = arith.mulf %113, %97 : vector<8x32xf32>
    %117 = arith.mulf %112, %114 : vector<8x32xf32>
    %118 = arith.addf %116, %117 : vector<8x32xf32>
    %119 = math.tanh %118 : vector<8x32xf32>
    %120 = arith.mulf %115, %119 : vector<8x32xf32>
    %121 = arith.index_cast %103 : i32 to index
    %c0_35 = arith.constant 0 : index
    %122 = vector.load %arg12[%121, %c0_35] : memref<64x32xf32, #tpu.memory_space<vmem>>, vector<8x32xf32>
    tpu.vector_store %arg12[%121, %c0_35], %120 {strides = array<i32>} : memref<64x32xf32, #tpu.memory_space<vmem>>, vector<8x32xf32>,
    %c4_i32 = arith.constant 4 : i32
    %c8_i32_36 = arith.constant 8 : i32
    %123 = arith.muli %c4_i32, %c8_i32_36 : i32
    %124 = tpu.assume_multiple %123, 8 : i32
    %125 = arith.index_cast %124 : i32 to index
    %c0_37 = arith.constant 0 : index
    %126 = vector.load %arg11[%125, %c0_37] : memref<64x128xf32, #tpu.memory_space<vmem>>, vector<8x128xf32>
    %127 = arith.truncf %120 : vector<8x32xf32> to vector<8x32xbf16>
    %cst_38 = arith.constant dense<0.000000e+00> : vector<8x128xf32>
    %128 = tpu.matmul %127, %24, %cst_38 {dimension_numbers = #tpu.dot_dimension_numbers<[1], [0], [0], [1], [0, 0, 1, 1], [], []>} : vector<8x32xbf16>, vector<32x128xbf16>, vector<8x128xf32> -> vector<8x128xf32>
    %129 = arith.addf %126, %128 : vector<8x128xf32>
    %130 = math.tanh %129 : vector<8x128xf32>
    %131 = arith.mulf %130, %33 : vector<8x128xf32>
    %132 = arith.addf %131, %36 : vector<8x128xf32>
    %133 = vector.extract_strided_slice %132 {offsets = [0, 0], sizes = [8, 32], strides = [1, 1]} : vector<8x128xf32> to vector<8x32xf32>
    %134 = vector.extract_strided_slice %132 {offsets = [0, 32], sizes = [8, 32], strides = [1, 1]} : vector<8x128xf32> to vector<8x32xf32>
    %135 = vector.extract_strided_slice %132 {offsets = [0, 64], sizes = [8, 32], strides = [1, 1]} : vector<8x128xf32> to vector<8x32xf32>
    %136 = vector.extract_strided_slice %132 {offsets = [0, 96], sizes = [8, 32], strides = [1, 1]} : vector<8x128xf32> to vector<8x32xf32>
    %137 = arith.mulf %134, %118 : vector<8x32xf32>
    %138 = arith.mulf %133, %135 : vector<8x32xf32>
    %139 = arith.addf %137, %138 : vector<8x32xf32>
    %140 = math.tanh %139 : vector<8x32xf32>
    %141 = arith.mulf %136, %140 : vector<8x32xf32>
    %142 = arith.index_cast %124 : i32 to index
    %c0_39 = arith.constant 0 : index
    %143 = vector.load %arg12[%142, %c0_39] : memref<64x32xf32, #tpu.memory_space<vmem>>, vector<8x32xf32>
    tpu.vector_store %arg12[%142, %c0_39], %141 {strides = array<i32>} : memref<64x32xf32, #tpu.memory_space<vmem>>, vector<8x32xf32>,
    %c5_i32 = arith.constant 5 : i32
    %c8_i32_40 = arith.constant 8 : i32
    %144 = arith.muli %c5_i32, %c8_i32_40 : i32
    %145 = tpu.assume_multiple %144, 8 : i32
    %146 = arith.index_cast %145 : i32 to index
    %c0_41 = arith.constant 0 : index
    %147 = vector.load %arg11[%146, %c0_41] : memref<64x128xf32, #tpu.memory_space<vmem>>, vector<8x128xf32>
    %148 = arith.truncf %141 : vector<8x32xf32> to vector<8x32xbf16>
    %cst_42 = arith.constant dense<0.000000e+00> : vector<8x128xf32>
    %149 = tpu.matmul %148, %24, %cst_42 {dimension_numbers = #tpu.dot_dimension_numbers<[1], [0], [0], [1], [0, 0, 1, 1], [], []>} : vector<8x32xbf16>, vector<32x128xbf16>, vector<8x128xf32> -> vector<8x128xf32>
    %150 = arith.addf %147, %149 : vector<8x128xf32>
    %151 = math.tanh %150 : vector<8x128xf32>
    %152 = arith.mulf %151, %33 : vector<8x128xf32>
    %153 = arith.addf %152, %36 : vector<8x128xf32>
    %154 = vector.extract_strided_slice %153 {offsets = [0, 0], sizes = [8, 32], strides = [1, 1]} : vector<8x128xf32> to vector<8x32xf32>
    %155 = vector.extract_strided_slice %153 {offsets = [0, 32], sizes = [8, 32], strides = [1, 1]} : vector<8x128xf32> to vector<8x32xf32>
    %156 = vector.extract_strided_slice %153 {offsets = [0, 64], sizes = [8, 32], strides = [1, 1]} : vector<8x128xf32> to vector<8x32xf32>
    %157 = vector.extract_strided_slice %153 {offsets = [0, 96], sizes = [8, 32], strides = [1, 1]} : vector<8x128xf32> to vector<8x32xf32>
    %158 = arith.mulf %155, %139 : vector<8x32xf32>
    %159 = arith.mulf %154, %156 : vector<8x32xf32>
    %160 = arith.addf %158, %159 : vector<8x32xf32>
    %161 = math.tanh %160 : vector<8x32xf32>
    %162 = arith.mulf %157, %161 : vector<8x32xf32>
    %163 = arith.index_cast %145 : i32 to index
    %c0_43 = arith.constant 0 : index
    %164 = vector.load %arg12[%163, %c0_43] : memref<64x32xf32, #tpu.memory_space<vmem>>, vector<8x32xf32>
    tpu.vector_store %arg12[%163, %c0_43], %162 {strides = array<i32>} : memref<64x32xf32, #tpu.memory_space<vmem>>, vector<8x32xf32>,
    %c6_i32 = arith.constant 6 : i32
    %c8_i32_44 = arith.constant 8 : i32
    %165 = arith.muli %c6_i32, %c8_i32_44 : i32
    %166 = tpu.assume_multiple %165, 8 : i32
    %167 = arith.index_cast %166 : i32 to index
    %c0_45 = arith.constant 0 : index
    %168 = vector.load %arg11[%167, %c0_45] : memref<64x128xf32, #tpu.memory_space<vmem>>, vector<8x128xf32>
    %169 = arith.truncf %162 : vector<8x32xf32> to vector<8x32xbf16>
    %cst_46 = arith.constant dense<0.000000e+00> : vector<8x128xf32>
    %170 = tpu.matmul %169, %24, %cst_46 {dimension_numbers = #tpu.dot_dimension_numbers<[1], [0], [0], [1], [0, 0, 1, 1], [], []>} : vector<8x32xbf16>, vector<32x128xbf16>, vector<8x128xf32> -> vector<8x128xf32>
    %171 = arith.addf %168, %170 : vector<8x128xf32>
    %172 = math.tanh %171 : vector<8x128xf32>
    %173 = arith.mulf %172, %33 : vector<8x128xf32>
    %174 = arith.addf %173, %36 : vector<8x128xf32>
    %175 = vector.extract_strided_slice %174 {offsets = [0, 0], sizes = [8, 32], strides = [1, 1]} : vector<8x128xf32> to vector<8x32xf32>
    %176 = vector.extract_strided_slice %174 {offsets = [0, 32], sizes = [8, 32], strides = [1, 1]} : vector<8x128xf32> to vector<8x32xf32>
    %177 = vector.extract_strided_slice %174 {offsets = [0, 64], sizes = [8, 32], strides = [1, 1]} : vector<8x128xf32> to vector<8x32xf32>
    %178 = vector.extract_strided_slice %174 {offsets = [0, 96], sizes = [8, 32], strides = [1, 1]} : vector<8x128xf32> to vector<8x32xf32>
    %179 = arith.mulf %176, %160 : vector<8x32xf32>
    %180 = arith.mulf %175, %177 : vector<8x32xf32>
    %181 = arith.addf %179, %180 : vector<8x32xf32>
    %182 = math.tanh %181 : vector<8x32xf32>
    %183 = arith.mulf %178, %182 : vector<8x32xf32>
    %184 = arith.index_cast %166 : i32 to index
    %c0_47 = arith.constant 0 : index
    %185 = vector.load %arg12[%184, %c0_47] : memref<64x32xf32, #tpu.memory_space<vmem>>, vector<8x32xf32>
    tpu.vector_store %arg12[%184, %c0_47], %183 {strides = array<i32>} : memref<64x32xf32, #tpu.memory_space<vmem>>, vector<8x32xf32>,
    %c7_i32 = arith.constant 7 : i32
    %c8_i32_48 = arith.constant 8 : i32
    %186 = arith.muli %c7_i32, %c8_i32_48 : i32
    %187 = tpu.assume_multiple %186, 8 : i32
    %188 = arith.index_cast %187 : i32 to index
    %c0_49 = arith.constant 0 : index
    %189 = vector.load %arg11[%188, %c0_49] : memref<64x128xf32, #tpu.memory_space<vmem>>, vector<8x128xf32>
    %190 = arith.truncf %183 : vector<8x32xf32> to vector<8x32xbf16>
    %cst_50 = arith.constant dense<0.000000e+00> : vector<8x128xf32>
    %191 = tpu.matmul %190, %24, %cst_50 {dimension_numbers = #tpu.dot_dimension_numbers<[1], [0], [0], [1], [0, 0, 1, 1], [], []>} : vector<8x32xbf16>, vector<32x128xbf16>, vector<8x128xf32> -> vector<8x128xf32>
    %192 = arith.addf %189, %191 : vector<8x128xf32>
    %193 = math.tanh %192 : vector<8x128xf32>
    %194 = arith.mulf %193, %33 : vector<8x128xf32>
    %195 = arith.addf %194, %36 : vector<8x128xf32>
    %196 = vector.extract_strided_slice %195 {offsets = [0, 0], sizes = [8, 32], strides = [1, 1]} : vector<8x128xf32> to vector<8x32xf32>
    %197 = vector.extract_strided_slice %195 {offsets = [0, 32], sizes = [8, 32], strides = [1, 1]} : vector<8x128xf32> to vector<8x32xf32>
    %198 = vector.extract_strided_slice %195 {offsets = [0, 64], sizes = [8, 32], strides = [1, 1]} : vector<8x128xf32> to vector<8x32xf32>
    %199 = vector.extract_strided_slice %195 {offsets = [0, 96], sizes = [8, 32], strides = [1, 1]} : vector<8x128xf32> to vector<8x32xf32>
    %200 = arith.mulf %197, %181 : vector<8x32xf32>
    %201 = arith.mulf %196, %198 : vector<8x32xf32>
    %202 = arith.addf %200, %201 : vector<8x32xf32>
    %203 = math.tanh %202 : vector<8x32xf32>
    %204 = arith.mulf %199, %203 : vector<8x32xf32>
    %205 = arith.index_cast %187 : i32 to index
    %c0_51 = arith.constant 0 : index
    %206 = vector.load %arg12[%205, %c0_51] : memref<64x32xf32, #tpu.memory_space<vmem>>, vector<8x32xf32>
    tpu.vector_store %arg12[%205, %c0_51], %204 {strides = array<i32>} : memref<64x32xf32, #tpu.memory_space<vmem>>, vector<8x32xf32>,
    %c8_i32_52 = arith.constant 8 : i32
    %c0_53 = arith.constant 0 : index
    %c0_54 = arith.constant 0 : index
    %207 = vector.load %arg12[%c0_53, %c0_54] : memref<64x32xf32, #tpu.memory_space<vmem>>, vector<64x32xf32>
    %208 = arith.truncf %207 : vector<64x32xf32> to vector<64x32xbf16>
    %c0_55 = arith.constant 0 : index
    %c0_56 = arith.constant 0 : index
    %209 = vector.load %arg6[%c0_55, %c0_56] : memref<32x128xbf16, #tpu.memory_space<vmem>>, vector<32x128xbf16>
    %cst_57 = arith.constant dense<0.000000e+00> : vector<64x128xf32>
    %210 = tpu.matmul %208, %209, %cst_57 {dimension_numbers = #tpu.dot_dimension_numbers<[1], [0], [0], [1], [0, 0, 1, 1], [], []>} : vector<64x32xbf16>, vector<32x128xbf16>, vector<64x128xf32> -> vector<64x128xf32>
    %c0_58 = arith.constant 0 : index
    %c0_59 = arith.constant 0 : index
    %211 = vector.load %arg7[%c0_58, %c0_59] : memref<1x128xf32, #tpu.memory_space<vmem>>, vector<1x128xf32>
    %212 = vector.broadcast %211 : vector<1x128xf32> to vector<64x128xf32>
    %213 = arith.addf %210, %212 : vector<64x128xf32>
    %c0_60 = arith.constant 0 : index
    %c0_61 = arith.constant 0 : index
    %214 = vector.load %arg8[%c0_60, %c0_61] : memref<64x128xf32, #tpu.memory_space<vmem>>, vector<64x128xf32>
    tpu.vector_store %arg8[%c0_60, %c0_61], %213 {strides = array<i32>} : memref<64x128xf32, #tpu.memory_space<vmem>>, vector<64x128xf32>,
    %c0_62 = arith.constant 0 : index
    %c0_63 = arith.constant 0 : index
    %215 = vector.load %arg9[%c0_62, %c0_63] : memref<8x32xf32, #tpu.memory_space<vmem>>, vector<8x32xf32>
    tpu.vector_store %arg9[%c0_62, %c0_63], %204 {strides = array<i32>} : memref<8x32xf32, #tpu.memory_space<vmem>>, vector<8x32xf32>,
    %c0_64 = arith.constant 0 : index
    %c0_65 = arith.constant 0 : index
    %216 = vector.load %arg10[%c0_64, %c0_65] : memref<8x32xf32, #tpu.memory_space<vmem>>, vector<8x32xf32>
    tpu.vector_store %arg10[%c0_64, %c0_65], %202 {strides = array<i32>} : memref<8x32xf32, #tpu.memory_space<vmem>>, vector<8x32xf32>,
    return
  }
}

</mosaic_0001>

<llo_original>
// kernel: tpu_custom_call.1
$region0: #{tpu_custom_call.1}
  #allocation0 [shape = 'u32[]', space=smem, size = 0x4, offset = 0x4, fixed_abs, tag = 'smem constant byte address 0x4 - core index']
  #allocation1 [shape = 'u32[144,128]{1,0:T(1,128)}', space=vmem, size = 0x12000, scoped, tag = 'internal scratch']
  #allocation2 [shape = 'f32[64,128]{1,0:T(8,128)}', space=vmem, size = 0x8000, scoped, tag = 'scratch operand']
  #allocation3 [shape = 'f32[64,32]{1,0:T(8,128)}', space=vmem, size = 0x8000, scoped, tag = 'scratch operand']
  %s0 = inlined_call_operand.vmem [shape: f32[64,2], index: 0, kind: input, shape index: {}]
  %s1 = inlined_call_operand.vmem [shape: f32[2,32], index: 1, kind: input, shape index: {}]
  %s2 = inlined_call_operand.vmem [shape: f32[1,32], index: 2, kind: input, shape index: {}]
  %s3 = inlined_call_operand.vmem [shape: bf16[32,128], index: 3, kind: input, shape index: {}]
  %s4 = inlined_call_operand.vmem [shape: f32[1,128], index: 4, kind: input, shape index: {}]
  %s5 = inlined_call_operand.vmem [shape: bf16[32,128], index: 5, kind: input, shape index: {}]
  %s6 = inlined_call_operand.vmem [shape: bf16[32,128], index: 6, kind: input, shape index: {}]
  %s7 = inlined_call_operand.vmem [shape: f32[1,128], index: 7, kind: input, shape index: {}]
  %s8 = inlined_call_operand.hbm [shape: f32[64,128], index: 8, kind: output, shape index: {0}]
  %s9 = inlined_call_operand.hbm [shape: f32[8,32], index: 9, kind: output, shape index: {1}]
  %s10 = inlined_call_operand.hbm [shape: f32[8,32], index: 10, kind: output, shape index: {2}]
  %11 = xla_tuple %s8, %s9, %s10
  %s12 = sld [smem:[#allocation0]]
  $region58: #{tpu_custom_call.1} parent=0
    _
  %s14 = ssub.s32 1, %s12
  %s15 = scalar_select 0, %s14, %s12
  $region1: #{tpu_custom_call.1} parent=0
    #allocation4 [shape = 'u8[32768]{0}', space=vmem, size = 0x8000, scoped, tag = 'output window, operand 0, single buffered']
    #allocation5 [shape = 's32[1]{0}', space=sflag, size = 0x4, scoped, tag = 'scoped memory for tpu_custom_call.1']
    #allocation6 [shape = 'u8[4096]{0}', space=vmem, size = 0x1000, scoped, tag = 'output window, operand 1, single buffered']
    #allocation7 [shape = 's32[1]{0}', space=sflag, size = 0x4, scoped, tag = 'scoped memory for tpu_custom_call.1']
    #allocation8 [shape = 'u8[4096]{0}', space=vmem, size = 0x1000, scoped, tag = 'output window, operand 2, single buffered']
    %16 = vsyncpa [#allocation5], 0
    %17 = vsyncpa [#allocation7], 0
    // Predicated region
    $region2: #{tpu_custom_call.1} parent=1 // pred_check
      _
    $region3: #{tpu_custom_call.1} parent=1 // pred_check_branch
      %19 = sbr.rel (0) target = $region5
    $region4: #{tpu_custom_call.1} parent=1 // pred_region
      _
    $region5: #{tpu_custom_call.1} parent=1 // pred_fallthru
      _
    // Predicated region
    $region6: #{tpu_custom_call.1} parent=1 // pred_check
      _
    $region7: #{tpu_custom_call.1} parent=1 // pred_check_branch
      %21 = sbr.rel (0) target = $region9
    $region8: #{tpu_custom_call.1} parent=1 // pred_region
      _
    $region9: #{tpu_custom_call.1} parent=1 // pred_fallthru
      _
    // Predicated region
    $region10: #{tpu_custom_call.1} parent=1 // pred_check
      _
    $region11: #{tpu_custom_call.1} parent=1 // pred_check_branch
      %23 = sbr.rel (0) target = $region13
    $region12: #{tpu_custom_call.1} parent=1 // pred_region
      _
    $region13: #{tpu_custom_call.1} parent=1 // pred_fallthru
      _
    // Predicated region
    $region14: #{tpu_custom_call.1} parent=1 // pred_check
      _
    $region15: #{tpu_custom_call.1} parent=1 // pred_check_branch
      %25 = sbr.rel (0) target = $region17
    $region16: #{tpu_custom_call.1} parent=1 // pred_region
      _
    $region17: #{tpu_custom_call.1} parent=1 // pred_fallthru
      _
    // Predicated region
    $region18: #{tpu_custom_call.1} parent=1 // pred_check
      _
    $region19: #{tpu_custom_call.1} parent=1 // pred_check_branch
      %27 = sbr.rel (0) target = $region21
    $region20: #{tpu_custom_call.1} parent=1 // pred_region
      _
    $region21: #{tpu_custom_call.1} parent=1 // pred_fallthru
      _
    // Predicated region
    $region22: #{tpu_custom_call.1} parent=1 // pred_check
      _
    $region23: #{tpu_custom_call.1} parent=1 // pred_check_branch
      %29 = sbr.rel (0) target = $region25
    $region24: #{tpu_custom_call.1} parent=1 // pred_region
      _
    $region25: #{tpu_custom_call.1} parent=1 // pred_fallthru
      _
    // Predicated region
    $region26: #{tpu_custom_call.1} parent=1 // pred_check
      _
    $region27: #{tpu_custom_call.1} parent=1 // pred_check_branch
      %31 = sbr.rel (0) target = $region29
    $region28: #{tpu_custom_call.1} parent=1 // pred_region
      _
    $region29: #{tpu_custom_call.1} parent=1 // pred_fallthru
      _
    // Predicated region
    $region30: #{tpu_custom_call.1} parent=1 // pred_check
      _
    $region31: #{tpu_custom_call.1} parent=1 // pred_check_branch
      %33 = sbr.rel (0) target = $region33
    $region32: #{tpu_custom_call.1} parent=1 // pred_region
      _
    $region33: #{tpu_custom_call.1} parent=1 // pred_fallthru
      _
    %v35 = vld [vmem:[%s0] sm:$0xff]
    %v36 = vld [vmem:[%s0 + $0x8] sm:$0xff]
    %v37 = vld [vmem:[%s0 + $0x10] sm:$0xff]
    %v38 = vld [vmem:[%s0 + $0x18] sm:$0xff]
    %v39 = vld [vmem:[%s0 + $0x20] sm:$0xff]
    %v40 = vld [vmem:[%s0 + $0x28] sm:$0xff]
    %v41 = vld [vmem:[%s0 + $0x30] sm:$0xff]
    %v42 = vld [vmem:[%s0 + $0x38] sm:$0xff]
    %v43 = vld [vmem:[%s1] sm:$0x1]
    %45 = vset.pattern.permute.xlu0 0
    %46 = vperm.xlu0 %45, %v35
    %v47 = vpop.permute.xlu0 %46
    %50 = vset.pattern.permute.xlu0 0
    %51 = vperm.xlu0 %50, %v36
    %v52 = vpop.permute.xlu0 %51
    %55 = vset.pattern.permute.xlu0 0
    %56 = vperm.xlu0 %55, %v37
    %v57 = vpop.permute.xlu0 %56
    %60 = vset.pattern.permute.xlu0 0
    %61 = vperm.xlu0 %60, %v38
    %v62 = vpop.permute.xlu0 %61
    %65 = vset.pattern.permute.xlu0 0
    %66 = vperm.xlu0 %65, %v39
    %v67 = vpop.permute.xlu0 %66
    %70 = vset.pattern.permute.xlu0 0
    %71 = vperm.xlu0 %70, %v40
    %v72 = vpop.permute.xlu0 %71
    %75 = vset.pattern.permute.xlu0 0
    %76 = vperm.xlu0 %75, %v41
    %v77 = vpop.permute.xlu0 %76
    %80 = vset.pattern.permute.xlu0 0
    %81 = vperm.xlu0 %80, %v42
    %v82 = vpop.permute.xlu0 %81
    %v84 = vlaneseq
    %v85 = vshrl.u32 %v84, 7
    %v86 = vsub.s32 0, %v85
    %v87 = vrot.slane %v43, %v86
    %v88 = vmul.f32 %v47, %v87
    %v89 = vmul.f32 %v52, %v87
    %v90 = vmul.f32 %v57, %v87
    %v91 = vmul.f32 %v62, %v87
    %v92 = vmul.f32 %v67, %v87
    %v93 = vmul.f32 %v72, %v87
    %v94 = vmul.f32 %v77, %v87
    %v95 = vmul.f32 %v82, %v87
    %v96 = vld [vmem:[%s1 + $0x1] sm:$0x1]
    %97 = vset.pattern.permute.xlu0 1
    %98 = vperm.xlu0 %97, %v35
    %v99 = vpop.permute.xlu0 %98
    %101 = vset.pattern.permute.xlu0 1
    %102 = vperm.xlu0 %101, %v36
    %v103 = vpop.permute.xlu0 %102
    %105 = vset.pattern.permute.xlu0 1
    %106 = vperm.xlu0 %105, %v37
    %v107 = vpop.permute.xlu0 %106
    %109 = vset.pattern.permute.xlu0 1
    %110 = vperm.xlu0 %109, %v38
    %v111 = vpop.permute.xlu0 %110
    %113 = vset.pattern.permute.xlu0 1
    %114 = vperm.xlu0 %113, %v39
    %v115 = vpop.permute.xlu0 %114
    %117 = vset.pattern.permute.xlu0 1
    %118 = vperm.xlu0 %117, %v40
    %v119 = vpop.permute.xlu0 %118
    %121 = vset.pattern.permute.xlu0 1
    %122 = vperm.xlu0 %121, %v41
    %v123 = vpop.permute.xlu0 %122
    %125 = vset.pattern.permute.xlu0 1
    %126 = vperm.xlu0 %125, %v42
    %v127 = vpop.permute.xlu0 %126
    %v129 = vlaneseq
    %v130 = vshrl.u32 %v129, 7
    %v131 = vsub.s32 0, %v130
    %v132 = vrot.slane %v96, %v131
    %v133 = vmul.f32 %v99, %v132
    %v134 = vmul.f32 %v103, %v132
    %v135 = vmul.f32 %v107, %v132
    %v136 = vmul.f32 %v111, %v132
    %v137 = vmul.f32 %v115, %v132
    %v138 = vmul.f32 %v119, %v132
    %v139 = vmul.f32 %v123, %v132
    %v140 = vmul.f32 %v127, %v132
    %v141 = vadd.f32 %v88, %v133
    %v142 = vadd.f32 %v89, %v134
    %v143 = vadd.f32 %v90, %v135
    %v144 = vadd.f32 %v91, %v136
    %v145 = vadd.f32 %v92, %v137
    %v146 = vadd.f32 %v93, %v138
    %v147 = vadd.f32 %v94, %v139
    %v148 = vadd.f32 %v95, %v140
    %v149 = vld [vmem:[%s2] sm:$0x1]
    %v151 = vlaneseq
    %v152 = vshrl.u32 %v151, 7
    %v153 = vsub.s32 0, %v152
    %v154 = vrot.slane %v149, %v153
    %v156 = vadd.f32 %v141, %v154
    %v157 = vadd.f32 %v142, %v154
    %v158 = vadd.f32 %v143, %v154
    %v159 = vadd.f32 %v144, %v154
    %v160 = vadd.f32 %v145, %v154
    %v161 = vadd.f32 %v146, %v154
    %v162 = vadd.f32 %v147, %v154
    %v163 = vadd.f32 %v148, %v154
    %v164 = vmax.f32 %v156, 0.0
    %v165 = vmax.f32 %v157, 0.0
    %v166 = vmax.f32 %v158, 0.0
    %v167 = vmax.f32 %v159, 0.0
    %v168 = vmax.f32 %v160, 0.0
    %v169 = vmax.f32 %v161, 0.0
    %v170 = vmax.f32 %v162, 0.0
    %v171 = vmax.f32 %v163, 0.0
    %v172 = vpack.c.bf16 %v165, %v164
    %v173 = vpack.c.bf16 %v167, %v166
    %v174 = vpack.c.bf16 %v169, %v168
    %v175 = vpack.c.bf16 %v171, %v170
    %v176 = vld [vmem:[%s3] sm:$0xf]
    %v177 = vld [vmem:[%s3 + $0x4] sm:$0xf]
    %v178 = vld [vmem:[%s3 + $0x8] sm:$0xf]
    %v179 = vld [vmem:[%s3 + $0xc] sm:$0xf]
    %v180 = vld [vmem:[%s4] sm:$0x1]
    %v182 = vlaneseq
    %v183 = vshrl.u32 %v182, 7
    %v184 = vsub.s32 0, %v183
    %v185 = vrot.slane %v180, %v184
    %v191 = vunpack.c.l.b16 %v176
    %v192 = vunpack.c.l.b16 %v177
    %v193 = vunpack.c.l.b16 %v178
    %v194 = vunpack.c.l.b16 %v179
    %v195 = vpack.c.b16 %v192, %v191
    %v196 = vpack.c.b16 %v194, %v193
    %vm199 = vcmask 261120
    %v201 = vsel %vm199, %v172, 0
    %v204 = vsel %vm199, %v173, 0
    %v207 = vsel %vm199, %v174, 0
    %v210 = vsel %vm199, %v175, 0
    %212 = vmatprep.subr.bf16.mxu0 0
    %213 = vmatpush1.bf16.msra.mxu0 0
    %214 = vmatprep.subr.bf16.mxu0 0
    %215 = vmatpush1.bf16.msra.mxu0 0
    %216 = vmatprep.subr.bf16.mxu0 0
    %217 = vmatpush1.bf16.msra.mxu0 0
    %218 = vmatprep.subr.bf16.mxu0 0
    %219 = vmatpush1.bf16.msra.mxu0 0
    %220 = vmatprep.subr.bf16.mxu0 0
    %221 = vmatpush1.bf16.msra.mxu0 0
    %222 = vmatprep.subr.bf16.mxu0 0
    %223 = vmatpush1.bf16.msra.mxu0 0
    %224 = vmatprep.subr.bf16.mxu0 0
    %225 = vmatpush1.bf16.msra.mxu0 %v196
    %226 = vmatprep.subr.bf16.mxu0 0
    %227 = vmatpush1.bf16.msra.mxu0 %v195
    %228 = vmatprep.subr.bf16.mxu0 0
    %229 = vmatpush2.bf16.msra.mxu0 0
    %230 = vmatprep.subr.bf16.mxu0 0
    %231 = vmatpush2.bf16.msra.mxu0 0
    %232 = vmatprep.subr.bf16.mxu0 0
    %233 = vmatpush2.bf16.msra.mxu0 0
    %234 = vmatprep.subr.bf16.mxu0 0
    %235 = vmatpush2.bf16.msra.mxu0 0
    %236 = vmatprep.subr.bf16.mxu0 0
    %237 = vmatpush2.bf16.msra.mxu0 0
    %238 = vmatprep.subr.bf16.mxu0 0
    %239 = vmatpush2.bf16.msra.mxu0 0
    %240 = vmatprep.subr.bf16.mxu0 0
    %241 = vmatpush2.bf16.msra.mxu0 0
    %242 = vmatprep.subr.bf16.mxu0 0
    %243 = vmatpush2.bf16.msra.mxu0 0
    %244 = vmatprep.mubr.bf16.mxu0 0
    %245 = vmatmul.mubr.bf16.gmra.mxu0 %v201
    %v246 = vpop.f32.mrf.mxu0
    %v247 = vadd.f32 %v185, %v246
    %v248 = vpop.f32.mrf.mxu0
    %v249 = vpop.f32.mrf.mxu0
    %v250 = vadd.f32 %v185, %v249
    %v251 = vpop.f32.mrf.mxu0
    %252 = vmatprep.mubr.bf16.mxu0 0
    %253 = vmatmul.mubr.bf16.gmra.mxu0 %v204
    %v254 = vpop.f32.mrf.mxu0
    %v255 = vadd.f32 %v185, %v254
    %v256 = vpop.f32.mrf.mxu0
    %v257 = vpop.f32.mrf.mxu0
    %v258 = vadd.f32 %v185, %v257
    %v259 = vpop.f32.mrf.mxu0
    %260 = vmatprep.mubr.bf16.mxu0 0
    %261 = vmatmul.mubr.bf16.gmra.mxu0 %v207
    %v262 = vpop.f32.mrf.mxu0
    %v263 = vadd.f32 %v185, %v262
    %v264 = vpop.f32.mrf.mxu0
    %v265 = vpop.f32.mrf.mxu0
    %v266 = vadd.f32 %v185, %v265
    %v267 = vpop.f32.mrf.mxu0
    %268 = vmatprep.mubr.bf16.mxu0 0
    %269 = vmatmul.mubr.bf16.gmra.mxu0 %v210
    %v270 = vpop.f32.mrf.mxu0
    %v271 = vadd.f32 %v185, %v270
    %v272 = vpop.f32.mrf.mxu0
    %v273 = vpop.f32.mrf.mxu0
    %v274 = vadd.f32 %v185, %v273
    %v275 = vpop.f32.mrf.mxu0
    %276 = vdwg.mxu0
    %277 = vst [vmem:[#allocation2] sm:$0xff] %v247
    %278 = vst [vmem:[#allocation2 + $0x8] sm:$0xff] %v250
    %279 = vst [vmem:[#allocation2 + $0x10] sm:$0xff] %v255
    %280 = vst [vmem:[#allocation2 + $0x18] sm:$0xff] %v258
    %281 = vst [vmem:[#allocation2 + $0x20] sm:$0xff] %v263
    %282 = vst [vmem:[#allocation2 + $0x28] sm:$0xff] %v266
    %283 = vst [vmem:[#allocation2 + $0x30] sm:$0xff] %v271
    %284 = vst [vmem:[#allocation2 + $0x38] sm:$0xff] %v274
    %v285 = vld [vmem:[%s5] sm:$0xf]
    %v286 = vld [vmem:[%s5 + $0x4] sm:$0xf]
    %v287 = vld [vmem:[%s5 + $0x8] sm:$0xf]
    %v288 = vld [vmem:[%s5 + $0xc] sm:$0xf]
    %v289 = vlaneseq
    %v290 = vand.u32 %v289, 127
    %vm291 = vcmp.ge.s32.totalorder %v290, 64
    %vm292 = vcmp.lt.s32.totalorder %v290, 96
    %vm293 = vmand %vm291, %vm292
    %v294 = vsel %vm293, 1.0, 0.5
    %v295 = vsel %vm293, 0.0, 0.5
    %v296 = vld [vmem:[#allocation2] sm:$0xff]
    %v301 = vunpack.c.l.b16 %v285
    %v302 = vunpack.c.l.b16 %v286
    %v303 = vunpack.c.l.b16 %v287
    %v304 = vunpack.c.l.b16 %v288
    %v305 = vpack.c.b16 %v302, %v301
    %v306 = vpack.c.b16 %v304, %v303
    %v310 = vsel %vm199, 0, 0
    %312 = vmatprep.subr.bf16.mxu0 0
    %313 = vmatpush1.bf16.msra.mxu0 0
    %314 = vmatprep.subr.bf16.mxu0 0
    %315 = vmatpush1.bf16.msra.mxu0 0
    %316 = vmatprep.subr.bf16.mxu0 0
    %317 = vmatpush1.bf16.msra.mxu0 0
    %318 = vmatprep.subr.bf16.mxu0 0
    %319 = vmatpush1.bf16.msra.mxu0 0
    %320 = vmatprep.subr.bf16.mxu0 0
    %321 = vmatpush1.bf16.msra.mxu0 0
    %322 = vmatprep.subr.bf16.mxu0 0
    %323 = vmatpush1.bf16.msra.mxu0 0
    %324 = vmatprep.subr.bf16.mxu0 0
    %325 = vmatpush1.bf16.msra.mxu0 %v306
    %326 = vmatprep.subr.bf16.mxu0 0
    %327 = vmatpush1.bf16.msra.mxu0 %v305
    %328 = vmatprep.subr.bf16.mxu0 0
    %329 = vmatpush2.bf16.msra.mxu0 0
    %330 = vmatprep.subr.bf16.mxu0 0
    %331 = vmatpush2.bf16.msra.mxu0 0
    %332 = vmatprep.subr.bf16.mxu0 0
    %333 = vmatpush2.bf16.msra.mxu0 0
    %334 = vmatprep.subr.bf16.mxu0 0
    %335 = vmatpush2.bf16.msra.mxu0 0
    %336 = vmatprep.subr.bf16.mxu0 0
    %337 = vmatpush2.bf16.msra.mxu0 0
    %338 = vmatprep.subr.bf16.mxu0 0
    %339 = vmatpush2.bf16.msra.mxu0 0
    %340 = vmatprep.subr.bf16.mxu0 0
    %341 = vmatpush2.bf16.msra.mxu0 0
    %342 = vmatprep.subr.bf16.mxu0 0
    %343 = vmatpush2.bf16.msra.mxu0 0
    %344 = vmatprep.mubr.bf16.mxu0 0
    %345 = vmatmul.mubr.bf16.gmra.mxu0 %v310
    %v346 = vpop.f32.mrf.mxu0
    %v347 = vadd.f32 0.0, %v346
    %v348 = vpop.f32.mrf.mxu0
    %v349 = vpop.f32.mrf.mxu0
    %v350 = vpop.f32.mrf.mxu0
    %351 = vdwg.mxu0
    %v352 = vadd.f32 %v296, %v347
    %v353 = vtanh.pop %v352
    %v354 = vmul.f32 %v353, %v294
    %v355 = vadd.f32 %v354, %v295
    %v356 = vmul.f32 %v355, 0.0
    %358 = vrot.lane.b32.xlu0 %v355, 64
    %v359 = vpop.permute.xlu0 %358
    %v361 = vmul.f32 %v355, %v359
    %363 = vrot.lane.b32.xlu0 %v361, 32
    %v364 = vpop.permute.xlu0 %363
    %v366 = vadd.f32 %v356, %v364
    %v367 = vtanh.pop %v366
    %369 = vrot.lane.b32.xlu0 %v367, 64
    %v370 = vpop.permute.xlu0 %369
    %v372 = vmul.f32 %v355, %v370
    %374 = vrot.lane.b32.xlu0 %v372, 32
    %v375 = vpop.permute.xlu0 %374
    %377 = vst.msk [vmem:[#allocation3] sm:$0xff] %vm199, %v375
    %s378 = scalar_lea.vmem [#allocation2], 8
    %v379 = vld [vmem:[%s378] sm:$0xff]
    %v380 = vpack.c.bf16 %v372, %v372
    %382 = vrot.lane.b32.xlu0 %v380, 32
    %v383 = vpop.permute.xlu0 %382
    %v385 = vsel %vm199, %v383, 0
    %387 = vmatprep.subr.bf16.mxu0 0
    %388 = vmatpush1.bf16.msra.mxu0 0
    %389 = vmatprep.subr.bf16.mxu0 0
    %390 = vmatpush1.bf16.msra.mxu0 0
    %391 = vmatprep.subr.bf16.mxu0 0
    %392 = vmatpush1.bf16.msra.mxu0 0
    %393 = vmatprep.subr.bf16.mxu0 0
    %394 = vmatpush1.bf16.msra.mxu0 0
    %395 = vmatprep.subr.bf16.mxu0 0
    %396 = vmatpush1.bf16.msra.mxu0 0
    %397 = vmatprep.subr.bf16.mxu0 0
    %398 = vmatpush1.bf16.msra.mxu0 0
    %399 = vmatprep.subr.bf16.mxu0 0
    %400 = vmatpush1.bf16.msra.mxu0 %v306
    %401 = vmatprep.subr.bf16.mxu0 0
    %402 = vmatpush1.bf16.msra.mxu0 %v305
    %403 = vmatprep.subr.bf16.mxu0 0
    %404 = vmatpush2.bf16.msra.mxu0 0
    %405 = vmatprep.subr.bf16.mxu0 0
    %406 = vmatpush2.bf16.msra.mxu0 0
    %407 = vmatprep.subr.bf16.mxu0 0
    %408 = vmatpush2.bf16.msra.mxu0 0
    %409 = vmatprep.subr.bf16.mxu0 0
    %410 = vmatpush2.bf16.msra.mxu0 0
    %411 = vmatprep.subr.bf16.mxu0 0
    %412 = vmatpush2.bf16.msra.mxu0 0
    %413 = vmatprep.subr.bf16.mxu0 0
    %414 = vmatpush2.bf16.msra.mxu0 0
    %415 = vmatprep.subr.bf16.mxu0 0
    %416 = vmatpush2.bf16.msra.mxu0 0
    %417 = vmatprep.subr.bf16.mxu0 0
    %418 = vmatpush2.bf16.msra.mxu0 0
    %419 = vmatprep.mubr.bf16.mxu0 0
    %420 = vmatmul.mubr.bf16.gmra.mxu0 %v385
    %v421 = vpop.f32.mrf.mxu0
    %v422 = vadd.f32 0.0, %v421
    %v423 = vpop.f32.mrf.mxu0
    %v424 = vpop.f32.mrf.mxu0
    %v425 = vpop.f32.mrf.mxu0
    %426 = vdwg.mxu0
    %v427 = vadd.f32 %v379, %v422
    %v428 = vtanh.pop %v427
    %v429 = vmul.f32 %v428, %v294
    %v430 = vadd.f32 %v429, %v295
    %v431 = vmul.f32 %v430, %v366
    %433 = vrot.lane.b32.xlu0 %v430, 64
    %v434 = vpop.permute.xlu0 %433
    %v436 = vmul.f32 %v430, %v434
    %438 = vrot.lane.b32.xlu0 %v436, 32
    %v439 = vpop.permute.xlu0 %438
    %v441 = vadd.f32 %v431, %v439
    %v442 = vtanh.pop %v441
    %444 = vrot.lane.b32.xlu0 %v442, 64
    %v445 = vpop.permute.xlu0 %444
    %v447 = vmul.f32 %v430, %v445
    %449 = vrot.lane.b32.xlu0 %v447, 32
    %v450 = vpop.permute.xlu0 %449
    %s452 = scalar_lea.vmem [#allocation3], 8
    %453 = vst.msk [vmem:[%s452] sm:$0xff] %vm199, %v450
    %s454 = scalar_lea.vmem [#allocation2], 16
    %v455 = vld [vmem:[%s454] sm:$0xff]
    %v456 = vpack.c.bf16 %v447, %v447
    %458 = vrot.lane.b32.xlu0 %v456, 32
    %v459 = vpop.permute.xlu0 %458
    %v461 = vsel %vm199, %v459, 0
    %463 = vmatprep.subr.bf16.mxu0 0
    %464 = vmatpush1.bf16.msra.mxu0 0
    %465 = vmatprep.subr.bf16.mxu0 0
    %466 = vmatpush1.bf16.msra.mxu0 0
    %467 = vmatprep.subr.bf16.mxu0 0
    %468 = vmatpush1.bf16.msra.mxu0 0
    %469 = vmatprep.subr.bf16.mxu0 0
    %470 = vmatpush1.bf16.msra.mxu0 0
    %471 = vmatprep.subr.bf16.mxu0 0
    %472 = vmatpush1.bf16.msra.mxu0 0
    %473 = vmatprep.subr.bf16.mxu0 0
    %474 = vmatpush1.bf16.msra.mxu0 0
    %475 = vmatprep.subr.bf16.mxu0 0
    %476 = vmatpush1.bf16.msra.mxu0 %v306
    %477 = vmatprep.subr.bf16.mxu0 0
    %478 = vmatpush1.bf16.msra.mxu0 %v305
    %479 = vmatprep.subr.bf16.mxu0 0
    %480 = vmatpush2.bf16.msra.mxu0 0
    %481 = vmatprep.subr.bf16.mxu0 0
    %482 = vmatpush2.bf16.msra.mxu0 0
    %483 = vmatprep.subr.bf16.mxu0 0
    %484 = vmatpush2.bf16.msra.mxu0 0
    %485 = vmatprep.subr.bf16.mxu0 0
    %486 = vmatpush2.bf16.msra.mxu0 0
    %487 = vmatprep.subr.bf16.mxu0 0
    %488 = vmatpush2.bf16.msra.mxu0 0
    %489 = vmatprep.subr.bf16.mxu0 0
    %490 = vmatpush2.bf16.msra.mxu0 0
    %491 = vmatprep.subr.bf16.mxu0 0
    %492 = vmatpush2.bf16.msra.mxu0 0
    %493 = vmatprep.subr.bf16.mxu0 0
    %494 = vmatpush2.bf16.msra.mxu0 0
    %495 = vmatprep.mubr.bf16.mxu0 0
    %496 = vmatmul.mubr.bf16.gmra.mxu0 %v461
    %v497 = vpop.f32.mrf.mxu0
    %v498 = vadd.f32 0.0, %v497
    %v499 = vpop.f32.mrf.mxu0
    %v500 = vpop.f32.mrf.mxu0
    %v501 = vpop.f32.mrf.mxu0
    %502 = vdwg.mxu0
    %v503 = vadd.f32 %v455, %v498
    %v504 = vtanh.pop %v503
    %v505 = vmul.f32 %v504, %v294
    %v506 = vadd.f32 %v505, %v295
    %v507 = vmul.f32 %v506, %v441
    %509 = vrot.lane.b32.xlu0 %v506, 64
    %v510 = vpop.permute.xlu0 %509
    %v512 = vmul.f32 %v506, %v510
    %514 = vrot.lane.b32.xlu0 %v512, 32
    %v515 = vpop.permute.xlu0 %514
    %v517 = vadd.f32 %v507, %v515
    %v518 = vtanh.pop %v517
    %520 = vrot.lane.b32.xlu0 %v518, 64
    %v521 = vpop.permute.xlu0 %520
    %v523 = vmul.f32 %v506, %v521
    %525 = vrot.lane.b32.xlu0 %v523, 32
    %v526 = vpop.permute.xlu0 %525
    %s528 = scalar_lea.vmem [#allocation3], 16
    %529 = vst.msk [vmem:[%s528] sm:$0xff] %vm199, %v526
    %s530 = scalar_lea.vmem [#allocation2], 24
    %v531 = vld [vmem:[%s530] sm:$0xff]
    %v532 = vpack.c.bf16 %v523, %v523
    %534 = vrot.lane.b32.xlu0 %v532, 32
    %v535 = vpop.permute.xlu0 %534
    %v537 = vsel %vm199, %v535, 0
    %539 = vmatprep.subr.bf16.mxu0 0
    %540 = vmatpush1.bf16.msra.mxu0 0
    %541 = vmatprep.subr.bf16.mxu0 0
    %542 = vmatpush1.bf16.msra.mxu0 0
    %543 = vmatprep.subr.bf16.mxu0 0
    %544 = vmatpush1.bf16.msra.mxu0 0
    %545 = vmatprep.subr.bf16.mxu0 0
    %546 = vmatpush1.bf16.msra.mxu0 0
    %547 = vmatprep.subr.bf16.mxu0 0
    %548 = vmatpush1.bf16.msra.mxu0 0
    %549 = vmatprep.subr.bf16.mxu0 0
    %550 = vmatpush1.bf16.msra.mxu0 0
    %551 = vmatprep.subr.bf16.mxu0 0
    %552 = vmatpush1.bf16.msra.mxu0 %v306
    %553 = vmatprep.subr.bf16.mxu0 0
    %554 = vmatpush1.bf16.msra.mxu0 %v305
    %555 = vmatprep.subr.bf16.mxu0 0
    %556 = vmatpush2.bf16.msra.mxu0 0
    %557 = vmatprep.subr.bf16.mxu0 0
    %558 = vmatpush2.bf16.msra.mxu0 0
    %559 = vmatprep.subr.bf16.mxu0 0
    %560 = vmatpush2.bf16.msra.mxu0 0
    %561 = vmatprep.subr.bf16.mxu0 0
    %562 = vmatpush2.bf16.msra.mxu0 0
    %563 = vmatprep.subr.bf16.mxu0 0
    %564 = vmatpush2.bf16.msra.mxu0 0
    %565 = vmatprep.subr.bf16.mxu0 0
    %566 = vmatpush2.bf16.msra.mxu0 0
    %567 = vmatprep.subr.bf16.mxu0 0
    %568 = vmatpush2.bf16.msra.mxu0 0
    %569 = vmatprep.subr.bf16.mxu0 0
    %570 = vmatpush2.bf16.msra.mxu0 0
    %571 = vmatprep.mubr.bf16.mxu0 0
    %572 = vmatmul.mubr.bf16.gmra.mxu0 %v537
    %v573 = vpop.f32.mrf.mxu0
    %v574 = vadd.f32 0.0, %v573
    %v575 = vpop.f32.mrf.mxu0
    %v576 = vpop.f32.mrf.mxu0
    %v577 = vpop.f32.mrf.mxu0
    %578 = vdwg.mxu0
    %v579 = vadd.f32 %v531, %v574
    %v580 = vtanh.pop %v579
    %v581 = vmul.f32 %v580, %v294
    %v582 = vadd.f32 %v581, %v295
    %v583 = vmul.f32 %v582, %v517
    %585 = vrot.lane.b32.xlu0 %v582, 64
    %v586 = vpop.permute.xlu0 %585
    %v588 = vmul.f32 %v582, %v586
    %590 = vrot.lane.b32.xlu0 %v588, 32
    %v591 = vpop.permute.xlu0 %590
    %v593 = vadd.f32 %v583, %v591
    %v594 = vtanh.pop %v593
    %596 = vrot.lane.b32.xlu0 %v594, 64
    %v597 = vpop.permute.xlu0 %596
    %v599 = vmul.f32 %v582, %v597
    %601 = vrot.lane.b32.xlu0 %v599, 32
    %v602 = vpop.permute.xlu0 %601
    %s604 = scalar_lea.vmem [#allocation3], 24
    %605 = vst.msk [vmem:[%s604] sm:$0xff] %vm199, %v602
    %s606 = scalar_lea.vmem [#allocation2], 32
    %v607 = vld [vmem:[%s606] sm:$0xff]
    %v608 = vpack.c.bf16 %v599, %v599
    %610 = vrot.lane.b32.xlu0 %v608, 32
    %v611 = vpop.permute.xlu0 %610
    %v613 = vsel %vm199, %v611, 0
    %615 = vmatprep.subr.bf16.mxu0 0
    %616 = vmatpush1.bf16.msra.mxu0 0
    %617 = vmatprep.subr.bf16.mxu0 0
    %618 = vmatpush1.bf16.msra.mxu0 0
    %619 = vmatprep.subr.bf16.mxu0 0
    %620 = vmatpush1.bf16.msra.mxu0 0
    %621 = vmatprep.subr.bf16.mxu0 0
    %622 = vmatpush1.bf16.msra.mxu0 0
    %623 = vmatprep.subr.bf16.mxu0 0
    %624 = vmatpush1.bf16.msra.mxu0 0
    %625 = vmatprep.subr.bf16.mxu0 0
    %626 = vmatpush1.bf16.msra.mxu0 0
    %627 = vmatprep.subr.bf16.mxu0 0
    %628 = vmatpush1.bf16.msra.mxu0 %v306
    %629 = vmatprep.subr.bf16.mxu0 0
    %630 = vmatpush1.bf16.msra.mxu0 %v305
    %631 = vmatprep.subr.bf16.mxu0 0
    %632 = vmatpush2.bf16.msra.mxu0 0
    %633 = vmatprep.subr.bf16.mxu0 0
    %634 = vmatpush2.bf16.msra.mxu0 0
    %635 = vmatprep.subr.bf16.mxu0 0
    %636 = vmatpush2.bf16.msra.mxu0 0
    %637 = vmatprep.subr.bf16.mxu0 0
    %638 = vmatpush2.bf16.msra.mxu0 0
    %639 = vmatprep.subr.bf16.mxu0 0
    %640 = vmatpush2.bf16.msra.mxu0 0
    %641 = vmatprep.subr.bf16.mxu0 0
    %642 = vmatpush2.bf16.msra.mxu0 0
    %643 = vmatprep.subr.bf16.mxu0 0
    %644 = vmatpush2.bf16.msra.mxu0 0
    %645 = vmatprep.subr.bf16.mxu0 0
    %646 = vmatpush2.bf16.msra.mxu0 0
    %647 = vmatprep.mubr.bf16.mxu0 0
    %648 = vmatmul.mubr.bf16.gmra.mxu0 %v613
    %v649 = vpop.f32.mrf.mxu0
    %v650 = vadd.f32 0.0, %v649
    %v651 = vpop.f32.mrf.mxu0
    %v652 = vpop.f32.mrf.mxu0
    %v653 = vpop.f32.mrf.mxu0
    %654 = vdwg.mxu0
    %v655 = vadd.f32 %v607, %v650
    %v656 = vtanh.pop %v655
    %v657 = vmul.f32 %v656, %v294
    %v658 = vadd.f32 %v657, %v295
    %v659 = vmul.f32 %v658, %v593
    %661 = vrot.lane.b32.xlu0 %v658, 64
    %v662 = vpop.permute.xlu0 %661
    %v664 = vmul.f32 %v658, %v662
    %666 = vrot.lane.b32.xlu0 %v664, 32
    %v667 = vpop.permute.xlu0 %666
    %v669 = vadd.f32 %v659, %v667
    %v670 = vtanh.pop %v669
    %672 = vrot.lane.b32.xlu0 %v670, 64
    %v673 = vpop.permute.xlu0 %672
    %v675 = vmul.f32 %v658, %v673
    %677 = vrot.lane.b32.xlu0 %v675, 32
    %v678 = vpop.permute.xlu0 %677
    %s680 = scalar_lea.vmem [#allocation3], 32
    %681 = vst.msk [vmem:[%s680] sm:$0xff] %vm199, %v678
    %s682 = scalar_lea.vmem [#allocation2], 40
    %v683 = vld [vmem:[%s682] sm:$0xff]
    %v684 = vpack.c.bf16 %v675, %v675
    %686 = vrot.lane.b32.xlu0 %v684, 32
    %v687 = vpop.permute.xlu0 %686
    %v689 = vsel %vm199, %v687, 0
    %691 = vmatprep.subr.bf16.mxu0 0
    %692 = vmatpush1.bf16.msra.mxu0 0
    %693 = vmatprep.subr.bf16.mxu0 0
    %694 = vmatpush1.bf16.msra.mxu0 0
    %695 = vmatprep.subr.bf16.mxu0 0
    %696 = vmatpush1.bf16.msra.mxu0 0
    %697 = vmatprep.subr.bf16.mxu0 0
    %698 = vmatpush1.bf16.msra.mxu0 0
    %699 = vmatprep.subr.bf16.mxu0 0
    %700 = vmatpush1.bf16.msra.mxu0 0
    %701 = vmatprep.subr.bf16.mxu0 0
    %702 = vmatpush1.bf16.msra.mxu0 0
    %703 = vmatprep.subr.bf16.mxu0 0
    %704 = vmatpush1.bf16.msra.mxu0 %v306
    %705 = vmatprep.subr.bf16.mxu0 0
    %706 = vmatpush1.bf16.msra.mxu0 %v305
    %707 = vmatprep.subr.bf16.mxu0 0
    %708 = vmatpush2.bf16.msra.mxu0 0
    %709 = vmatprep.subr.bf16.mxu0 0
    %710 = vmatpush2.bf16.msra.mxu0 0
    %711 = vmatprep.subr.bf16.mxu0 0
    %712 = vmatpush2.bf16.msra.mxu0 0
    %713 = vmatprep.subr.bf16.mxu0 0
    %714 = vmatpush2.bf16.msra.mxu0 0
    %715 = vmatprep.subr.bf16.mxu0 0
    %716 = vmatpush2.bf16.msra.mxu0 0
    %717 = vmatprep.subr.bf16.mxu0 0
    %718 = vmatpush2.bf16.msra.mxu0 0
    %719 = vmatprep.subr.bf16.mxu0 0
    %720 = vmatpush2.bf16.msra.mxu0 0
    %721 = vmatprep.subr.bf16.mxu0 0
    %722 = vmatpush2.bf16.msra.mxu0 0
    %723 = vmatprep.mubr.bf16.mxu0 0
    %724 = vmatmul.mubr.bf16.gmra.mxu0 %v689
    %v725 = vpop.f32.mrf.mxu0
    %v726 = vadd.f32 0.0, %v725
    %v727 = vpop.f32.mrf.mxu0
    %v728 = vpop.f32.mrf.mxu0
    %v729 = vpop.f32.mrf.mxu0
    %730 = vdwg.mxu0
    %v731 = vadd.f32 %v683, %v726
    %v732 = vtanh.pop %v731
    %v733 = vmul.f32 %v732, %v294
    %v734 = vadd.f32 %v733, %v295
    %v735 = vmul.f32 %v734, %v669
    %737 = vrot.lane.b32.xlu0 %v734, 64
    %v738 = vpop.permute.xlu0 %737
    %v740 = vmul.f32 %v734, %v738
    %742 = vrot.lane.b32.xlu0 %v740, 32
    %v743 = vpop.permute.xlu0 %742
    %v745 = vadd.f32 %v735, %v743
    %v746 = vtanh.pop %v745
    %748 = vrot.lane.b32.xlu0 %v746, 64
    %v749 = vpop.permute.xlu0 %748
    %v751 = vmul.f32 %v734, %v749
    %753 = vrot.lane.b32.xlu0 %v751, 32
    %v754 = vpop.permute.xlu0 %753
    %s756 = scalar_lea.vmem [#allocation3], 40
    %757 = vst.msk [vmem:[%s756] sm:$0xff] %vm199, %v754
    %s758 = scalar_lea.vmem [#allocation2], 48
    %v759 = vld [vmem:[%s758] sm:$0xff]
    %v760 = vpack.c.bf16 %v751, %v751
    %762 = vrot.lane.b32.xlu0 %v760, 32
    %v763 = vpop.permute.xlu0 %762
    %v765 = vsel %vm199, %v763, 0
    %767 = vmatprep.subr.bf16.mxu0 0
    %768 = vmatpush1.bf16.msra.mxu0 0
    %769 = vmatprep.subr.bf16.mxu0 0
    %770 = vmatpush1.bf16.msra.mxu0 0
    %771 = vmatprep.subr.bf16.mxu0 0
    %772 = vmatpush1.bf16.msra.mxu0 0
    %773 = vmatprep.subr.bf16.mxu0 0
    %774 = vmatpush1.bf16.msra.mxu0 0
    %775 = vmatprep.subr.bf16.mxu0 0
    %776 = vmatpush1.bf16.msra.mxu0 0
    %777 = vmatprep.subr.bf16.mxu0 0
    %778 = vmatpush1.bf16.msra.mxu0 0
    %779 = vmatprep.subr.bf16.mxu0 0
    %780 = vmatpush1.bf16.msra.mxu0 %v306
    %781 = vmatprep.subr.bf16.mxu0 0
    %782 = vmatpush1.bf16.msra.mxu0 %v305
    %783 = vmatprep.subr.bf16.mxu0 0
    %784 = vmatpush2.bf16.msra.mxu0 0
    %785 = vmatprep.subr.bf16.mxu0 0
    %786 = vmatpush2.bf16.msra.mxu0 0
    %787 = vmatprep.subr.bf16.mxu0 0
    %788 = vmatpush2.bf16.msra.mxu0 0
    %789 = vmatprep.subr.bf16.mxu0 0
    %790 = vmatpush2.bf16.msra.mxu0 0
    %791 = vmatprep.subr.bf16.mxu0 0
    %792 = vmatpush2.bf16.msra.mxu0 0
    %793 = vmatprep.subr.bf16.mxu0 0
    %794 = vmatpush2.bf16.msra.mxu0 0
    %795 = vmatprep.subr.bf16.mxu0 0
    %796 = vmatpush2.bf16.msra.mxu0 0
    %797 = vmatprep.subr.bf16.mxu0 0
    %798 = vmatpush2.bf16.msra.mxu0 0
    %799 = vmatprep.mubr.bf16.mxu0 0
    %800 = vmatmul.mubr.bf16.gmra.mxu0 %v765
    %v801 = vpop.f32.mrf.mxu0
    %v802 = vadd.f32 0.0, %v801
    %v803 = vpop.f32.mrf.mxu0
    %v804 = vpop.f32.mrf.mxu0
    %v805 = vpop.f32.mrf.mxu0
    %806 = vdwg.mxu0
    %v807 = vadd.f32 %v759, %v802
    %v808 = vtanh.pop %v807
    %v809 = vmul.f32 %v808, %v294
    %v810 = vadd.f32 %v809, %v295
    %v811 = vmul.f32 %v810, %v745
    %813 = vrot.lane.b32.xlu0 %v810, 64
    %v814 = vpop.permute.xlu0 %813
    %v816 = vmul.f32 %v810, %v814
    %818 = vrot.lane.b32.xlu0 %v816, 32
    %v819 = vpop.permute.xlu0 %818
    %v821 = vadd.f32 %v811, %v819
    %v822 = vtanh.pop %v821
    %824 = vrot.lane.b32.xlu0 %v822, 64
    %v825 = vpop.permute.xlu0 %824
    %v827 = vmul.f32 %v810, %v825
    %829 = vrot.lane.b32.xlu0 %v827, 32
    %v830 = vpop.permute.xlu0 %829
    %s832 = scalar_lea.vmem [#allocation3], 48
    %833 = vst.msk [vmem:[%s832] sm:$0xff] %vm199, %v830
    %s834 = scalar_lea.vmem [#allocation2], 56
    %v835 = vld [vmem:[%s834] sm:$0xff]
    %v836 = vpack.c.bf16 %v827, %v827
    %838 = vrot.lane.b32.xlu0 %v836, 32
    %v839 = vpop.permute.xlu0 %838
    %v841 = vsel %vm199, %v839, 0
    %843 = vmatprep.subr.bf16.mxu0 0
    %844 = vmatpush1.bf16.msra.mxu0 0
    %845 = vmatprep.subr.bf16.mxu0 0
    %846 = vmatpush1.bf16.msra.mxu0 0
    %847 = vmatprep.subr.bf16.mxu0 0
    %848 = vmatpush1.bf16.msra.mxu0 0
    %849 = vmatprep.subr.bf16.mxu0 0
    %850 = vmatpush1.bf16.msra.mxu0 0
    %851 = vmatprep.subr.bf16.mxu0 0
    %852 = vmatpush1.bf16.msra.mxu0 0
    %853 = vmatprep.subr.bf16.mxu0 0
    %854 = vmatpush1.bf16.msra.mxu0 0
    %855 = vmatprep.subr.bf16.mxu0 0
    %856 = vmatpush1.bf16.msra.mxu0 %v306
    %857 = vmatprep.subr.bf16.mxu0 0
    %858 = vmatpush1.bf16.msra.mxu0 %v305
    %859 = vmatprep.subr.bf16.mxu0 0
    %860 = vmatpush2.bf16.msra.mxu0 0
    %861 = vmatprep.subr.bf16.mxu0 0
    %862 = vmatpush2.bf16.msra.mxu0 0
    %863 = vmatprep.subr.bf16.mxu0 0
    %864 = vmatpush2.bf16.msra.mxu0 0
    %865 = vmatprep.subr.bf16.mxu0 0
    %866 = vmatpush2.bf16.msra.mxu0 0
    %867 = vmatprep.subr.bf16.mxu0 0
    %868 = vmatpush2.bf16.msra.mxu0 0
    %869 = vmatprep.subr.bf16.mxu0 0
    %870 = vmatpush2.bf16.msra.mxu0 0
    %871 = vmatprep.subr.bf16.mxu0 0
    %872 = vmatpush2.bf16.msra.mxu0 0
    %873 = vmatprep.subr.bf16.mxu0 0
    %874 = vmatpush2.bf16.msra.mxu0 0
    %875 = vmatprep.mubr.bf16.mxu0 0
    %876 = vmatmul.mubr.bf16.gmra.mxu0 %v841
    %v877 = vpop.f32.mrf.mxu0
    %v878 = vadd.f32 0.0, %v877
    %v879 = vpop.f32.mrf.mxu0
    %v880 = vpop.f32.mrf.mxu0
    %v881 = vpop.f32.mrf.mxu0
    %882 = vdwg.mxu0
    %v883 = vadd.f32 %v835, %v878
    %v884 = vtanh.pop %v883
    %v885 = vmul.f32 %v884, %v294
    %v886 = vadd.f32 %v885, %v295
    %v887 = vmul.f32 %v886, %v821
    %889 = vrot.lane.b32.xlu0 %v886, 64
    %v890 = vpop.permute.xlu0 %889
    %v892 = vmul.f32 %v886, %v890
    %894 = vrot.lane.b32.xlu0 %v892, 32
    %v895 = vpop.permute.xlu0 %894
    %v897 = vadd.f32 %v887, %v895
    %v898 = vtanh.pop %v897
    %900 = vrot.lane.b32.xlu0 %v898, 64
    %v901 = vpop.permute.xlu0 %900
    %v903 = vmul.f32 %v886, %v901
    %905 = vrot.lane.b32.xlu0 %v903, 32
    %v906 = vpop.permute.xlu0 %905
    %s908 = scalar_lea.vmem [#allocation3], 56
    %909 = vst.msk [vmem:[%s908] sm:$0xff] %vm199, %v906
    %v910 = vld [vmem:[#allocation3] sm:$0xff]
    %v911 = vld [vmem:[#allocation3 + $0x8] sm:$0xff]
    %v912 = vld [vmem:[#allocation3 + $0x10] sm:$0xff]
    %v913 = vld [vmem:[#allocation3 + $0x18] sm:$0xff]
    %v914 = vld [vmem:[#allocation3 + $0x20] sm:$0xff]
    %v915 = vld [vmem:[#allocation3 + $0x28] sm:$0xff]
    %v916 = vld [vmem:[#allocation3 + $0x30] sm:$0xff]
    %v917 = vld [vmem:[#allocation3 + $0x38] sm:$0xff]
    %v918 = vpack.c.bf16 %v911, %v910
    %v919 = vpack.c.bf16 %v913, %v912
    %v920 = vpack.c.bf16 %v915, %v914
    %v921 = vpack.c.bf16 %v917, %v916
    %v922 = vld [vmem:[%s6] sm:$0xf]
    %v923 = vld [vmem:[%s6 + $0x4] sm:$0xf]
    %v924 = vld [vmem:[%s6 + $0x8] sm:$0xf]
    %v925 = vld [vmem:[%s6 + $0xc] sm:$0xf]
    %v926 = vld [vmem:[%s7] sm:$0x1]
    %v928 = vlaneseq
    %v929 = vshrl.u32 %v928, 7
    %v930 = vsub.s32 0, %v929
    %v931 = vrot.slane %v926, %v930
    %v937 = vunpack.c.l.b16 %v922
    %v938 = vunpack.c.l.b16 %v923
    %v939 = vunpack.c.l.b16 %v924
    %v940 = vunpack.c.l.b16 %v925
    %v941 = vpack.c.b16 %v938, %v937
    %v942 = vpack.c.b16 %v940, %v939
    %v946 = vsel %vm199, %v918, 0
    %v949 = vsel %vm199, %v919, 0
    %v952 = vsel %vm199, %v920, 0
    %v955 = vsel %vm199, %v921, 0
    %957 = vmatprep.subr.bf16.mxu0 0
    %958 = vmatpush1.bf16.msra.mxu0 0
    %959 = vmatprep.subr.bf16.mxu0 0
    %960 = vmatpush1.bf16.msra.mxu0 0
    %961 = vmatprep.subr.bf16.mxu0 0
    %962 = vmatpush1.bf16.msra.mxu0 0
    %963 = vmatprep.subr.bf16.mxu0 0
    %964 = vmatpush1.bf16.msra.mxu0 0
    %965 = vmatprep.subr.bf16.mxu0 0
    %966 = vmatpush1.bf16.msra.mxu0 0
    %967 = vmatprep.subr.bf16.mxu0 0
    %968 = vmatpush1.bf16.msra.mxu0 0
    %969 = vmatprep.subr.bf16.mxu0 0
    %970 = vmatpush1.bf16.msra.mxu0 %v942
    %971 = vmatprep.subr.bf16.mxu0 0
    %972 = vmatpush1.bf16.msra.mxu0 %v941
    %973 = vmatprep.subr.bf16.mxu0 0
    %974 = vmatpush2.bf16.msra.mxu0 0
    %975 = vmatprep.subr.bf16.mxu0 0
    %976 = vmatpush2.bf16.msra.mxu0 0
    %977 = vmatprep.subr.bf16.mxu0 0
    %978 = vmatpush2.bf16.msra.mxu0 0
    %979 = vmatprep.subr.bf16.mxu0 0
    %980 = vmatpush2.bf16.msra.mxu0 0
    %981 = vmatprep.subr.bf16.mxu0 0
    %982 = vmatpush2.bf16.msra.mxu0 0
    %983 = vmatprep.subr.bf16.mxu0 0
    %984 = vmatpush2.bf16.msra.mxu0 0
    %985 = vmatprep.subr.bf16.mxu0 0
    %986 = vmatpush2.bf16.msra.mxu0 0
    %987 = vmatprep.subr.bf16.mxu0 0
    %988 = vmatpush2.bf16.msra.mxu0 0
    %989 = vmatprep.mubr.bf16.mxu0 0
    %990 = vmatmul.mubr.bf16.gmra.mxu0 %v946
    %v991 = vpop.f32.mrf.mxu0
    %v992 = vadd.f32 %v931, %v991
    %v993 = vpop.f32.mrf.mxu0
    %v994 = vpop.f32.mrf.mxu0
    %v995 = vadd.f32 %v931, %v994
    %v996 = vpop.f32.mrf.mxu0
    %997 = vmatprep.mubr.bf16.mxu0 0
    %998 = vmatmul.mubr.bf16.gmra.mxu0 %v949
    %v999 = vpop.f32.mrf.mxu0
    %v1000 = vadd.f32 %v931, %v999
    %v1001 = vpop.f32.mrf.mxu0
    %v1002 = vpop.f32.mrf.mxu0
    %v1003 = vadd.f32 %v931, %v1002
    %v1004 = vpop.f32.mrf.mxu0
    %1005 = vmatprep.mubr.bf16.mxu0 0
    %1006 = vmatmul.mubr.bf16.gmra.mxu0 %v952
    %v1007 = vpop.f32.mrf.mxu0
    %v1008 = vadd.f32 %v931, %v1007
    %v1009 = vpop.f32.mrf.mxu0
    %v1010 = vpop.f32.mrf.mxu0
    %v1011 = vadd.f32 %v931, %v1010
    %v1012 = vpop.f32.mrf.mxu0
    %1013 = vmatprep.mubr.bf16.mxu0 0
    %1014 = vmatmul.mubr.bf16.gmra.mxu0 %v955
    %v1015 = vpop.f32.mrf.mxu0
    %v1016 = vadd.f32 %v931, %v1015
    %v1017 = vpop.f32.mrf.mxu0
    %v1018 = vpop.f32.mrf.mxu0
    %v1019 = vadd.f32 %v931, %v1018
    %v1020 = vpop.f32.mrf.mxu0
    %1021 = vdwg.mxu0
    %1022 = vst [vmem:[#allocation4] sm:$0xff] %v992
    %1023 = vst [vmem:[#allocation4 + $0x8] sm:$0xff] %v995
    %1024 = vst [vmem:[#allocation4 + $0x10] sm:$0xff] %v1000
    %1025 = vst [vmem:[#allocation4 + $0x18] sm:$0xff] %v1003
    %1026 = vst [vmem:[#allocation4 + $0x20] sm:$0xff] %v1008
    %1027 = vst [vmem:[#allocation4 + $0x28] sm:$0xff] %v1011
    %1028 = vst [vmem:[#allocation4 + $0x30] sm:$0xff] %v1016
    %1029 = vst [vmem:[#allocation4 + $0x38] sm:$0xff] %v1019
    %1030 = vst.msk [vmem:[#allocation6] sm:$0xff] %vm199, %v906
    %1032 = vrot.lane.b32.xlu0 %v897, 96
    %v1033 = vpop.permute.xlu0 %1032
    %1035 = vst.msk [vmem:[#allocation8] sm:$0xff] %vm199, %v1033
    // Predicated region
    $region34: #{tpu_custom_call.1} parent=1 // pred_check
      _
    $region35: #{tpu_custom_call.1} parent=1 // pred_check_branch
      %1037 = sbr.rel (0) target = $region37
    $region36: #{tpu_custom_call.1} parent=1 // pred_region
      %s1039 = ssub.s32 1024, 1024
      %1040 = vsyncadd [#allocation5], %s1039
      %s1041 = sshll.u32 [#allocation4], 4
      %s1042 = int_to_ptr.vmem [resolvable:$true] %s1041
      %1047 = dma.vmem_to_hbm [thread:$0]  %s1042, 1024, %s8, [#allocation5], 128, 128, 8
    $region37: #{tpu_custom_call.1} parent=1 // pred_fallthru
      _
    // Predicated region
    $region38: #{tpu_custom_call.1} parent=1 // pred_check
      _
    $region39: #{tpu_custom_call.1} parent=1 // pred_check_branch
      %1049 = sbr.rel (0) target = $region41
    $region40: #{tpu_custom_call.1} parent=1 // pred_region
      %s1051 = ssub.s32 128, 128
      %1052 = vsyncadd [#allocation7], %s1051
      %s1054 = sshll.u32 [#allocation6], 4
      %s1055 = int_to_ptr.vmem [resolvable:$true] %s1054
      %1057 = dma.vmem_to_hbm [thread:$0]  %s1055, 128, %s9, [#allocation7]
    $region41: #{tpu_custom_call.1} parent=1 // pred_fallthru
      _
    // Predicated region
    $region42: #{tpu_custom_call.1} parent=1 // pred_check
      _
    $region43: #{tpu_custom_call.1} parent=1 // pred_check_branch
      %1059 = sbr.rel (0) target = $region45
    $region44: #{tpu_custom_call.1} parent=1 // pred_region
      %s1061 = ssub.s32 128, 128
      %1062 = vsyncadd [#allocation7], %s1061
      %s1064 = sshll.u32 [#allocation8], 4
      %s1065 = int_to_ptr.vmem [resolvable:$true] %s1064
      %1067 = dma.vmem_to_hbm [thread:$0]  %s1065, 128, %s10, [#allocation7]
    $region45: #{tpu_custom_call.1} parent=1 // pred_fallthru
      _
    // Predicated region
    $region46: #{tpu_custom_call.1} parent=1 // pred_check
      _
    $region47: #{tpu_custom_call.1} parent=1 // pred_check_branch
      %1069 = sbr.rel (0) target = $region49
    $region48: #{tpu_custom_call.1} parent=1 // pred_region
      %1070 = dma.done [#allocation5], 1024
    $region49: #{tpu_custom_call.1} parent=1 // pred_fallthru
      _
    // Predicated region
    $region50: #{tpu_custom_call.1} parent=1 // pred_check
      _
    $region51: #{tpu_custom_call.1} parent=1 // pred_check_branch
      %1072 = sbr.rel (0) target = $region53
    $region52: #{tpu_custom_call.1} parent=1 // pred_region
      %1073 = dma.done [#allocation7], 128
    $region53: #{tpu_custom_call.1} parent=1 // pred_fallthru
      _
    // Predicated region
    $region54: #{tpu_custom_call.1} parent=1 // pred_check
      _
    $region55: #{tpu_custom_call.1} parent=1 // pred_check_branch
      %1075 = sbr.rel (0) target = $region57
    $region56: #{tpu_custom_call.1} parent=1 // pred_region
      %1076 = dma.done [#allocation7], 128
    $region57: #{tpu_custom_call.1} parent=1 // pred_fallthru
      _
    %1077 = vsyncpa [#allocation5], 1
    %1078 = vsyncpa [#allocation7], 1

</llo_original>
